<compile_context>
chip_gen: v7x
topology: tpu7x:2x2x1
jax: 0.10.0
libtpu: 0.0.40
codegen_flags: <defaults>
</compile_context>

<pallas_src>
import functools
import math

import numpy as np
import jax
import jax.numpy as jnp
from jax.experimental import pallas as pl
from jax.experimental.pallas import tpu as pltpu


def _round_up(a, m):
    return ((a + m - 1) // m) * m


def _cdiv(a, b):
    return (a + b - 1) // b


# ----------------------------- Pallas kernel ------------------------------- #

def _sincconv_kernel(x_cur_ref, x_nxt_ref, w_ref, o_ref, patch_ref, *,
                     groups, s, k2, fg_pad, c0, c_pad, lt, dt):
    """One (batch, time-tile) grid step.

    x_cur_ref: (1, groups*s, lt)       polyphase rows, current output tile
    x_nxt_ref: (1, groups*s, hb)       halo: first hb columns after the tile
    w_ref:     (groups*fg_pad, c_pad)  polyphase-permuted filters (dt)
    o_ref:     (1, groups*fg_pad, lt)  lane-dense output tile (x dtype)
    patch_ref: (c_pad, lt) f32 scratch -- im2col patches of one group
    """
    # Zero the contraction-padding rows once per step: their weight columns are
    # zero, but scratch memory is uninitialized and NaN * 0 == NaN.
    if c_pad > c0:
        patch_ref[c0:c_pad, :] = jnp.zeros((c_pad - c0, lt), jnp.float32)

    outs = []
    for g in range(groups):
        # --- im2col into VMEM scratch ------------------------------------
        # row r*k2 + j of patches = x_ph[g*s + r, base + j : base + j + lt]
        for r in range(s):
            row = g * s + r
            # Stitch "current tile + halo" window once per (group, phase);
            # both pieces are lane-aligned so the concat is cheap.
            wrow = jnp.concatenate(
                [x_cur_ref[0, row:row + 1, :], x_nxt_ref[0, row:row + 1, :]],
                axis=1).astype(jnp.float32)                     # (1, lt + hb)
            base_c = r * k2
            for j in range(k2):
                # Static lane-offset slice of an in-register window; stored
                # straight to scratch so register pressure stays bounded.
                patch_ref[base_c + j:base_c + j + 1, :] = wrow[:, j:j + lt]

        # --- MXU matmul, f32 accumulation ---------------------------------
        wg = w_ref[g * fg_pad:(g + 1) * fg_pad, :]              # (fg_pad, c_pad)
        pg = patch_ref[...].astype(dt)                          # (c_pad, lt)
        outs.append(jnp.dot(wg, pg, preferred_element_type=jnp.float32))

    res = outs[0] if groups == 1 else jnp.concatenate(outs, axis=0)
    # Single full-width (unmasked) store of the whole tile.
    o_ref[0, :, :] = res.astype(o_ref.dtype)


# ------------------------------- wrapper ----------------------------------- #

def sinc_conv1d(x, filters, *, strides, groups, l_tile=None,
                compute_dtype=jnp.bfloat16):
    """Grouped strided cross-correlation (PyTorch conv1d semantics).

    x:        (B, groups, L)    float32
    filters:  (N_filt, K)       float32
    compute_dtype: operand dtype fed to the MXU (accumulation is always f32).
        Default bf16 (halves x HBM traffic / VMEM; native MXU dtype); pass
        None or jnp.float32 for an exact-f32 path.  Note the weights are also
        cast to compute_dtype.
    """
    B, c_in, L = map(int, x.shape)
    n_filt, K = map(int, filters.shape)
    assert c_in == groups, "weight (N_filt,1,K) with `groups` groups => in_channels == groups"
    assert n_filt % groups == 0
    s = int(strides)
    fg = n_filt // groups
    fg_pad = _round_up(fg, 8)
    l_out = (L - K) // s + 1
    assert l_out > 0

    dt = jnp.dtype(x.dtype) if compute_dtype is None else jnp.dtype(compute_dtype)

    # Polyphase decomposition of the taps: tap k = j*s + r, j in [0,k2), r in [0,s).
    k2 = _cdiv(K, s)
    c0 = s * k2                          # real contraction length
    c_pad = _round_up(c0, 8)             # rounded once (not per phase)

    # ---- tile sizes --------------------------------------------------------
    hb = _round_up(max(k2 - 1, 1), 128)  # halo block width (covers taps j>=1)
    if l_tile is None:
        n_guess = max(1, _cdiv(l_out, 512))
        lt = _round_up(_cdiv(l_out, n_guess), 128)
    else:
        lt = _round_up(int(l_tile), 128)
    lt = _round_up(max(lt, hb), hb)      # halo block must divide the tile
    # Keep >= 2 grid steps when B == 1 so both v7x TensorCores get work.
    if B == 1 and _cdiv(l_out, lt) < 2 and l_out > hb:
        lt_try = _round_up(max(_cdiv(l_out, 2), 1), hb)
        if _cdiv(l_out, lt_try) >= 2:
            lt = lt_try
    assert lt % 128 == 0 and lt % hb == 0
    n_t = _cdiv(l_out, lt)
    l_out_pad = n_t * lt
    ratio = lt // hb

    Gs = groups * s
    Lp = n_t * lt + hb                   # per-phase length (multiple of 128)

    # ---- input: polyphase split only when strided ---------------------------
    total = Lp * s
    if total >= L:
        xp = jnp.pad(x, ((0, 0), (0, 0), (0, total - L)))
    else:
        xp = x[:, :, :total]             # tail never needed by valid outputs
    if s == 1:
        x_ph = xp.astype(dt)                                   # (B, G, Lp)
    else:
        # x_ph[b, g*s + r, m] = x[b, g, m*s + r]
        x_ph = (xp.reshape(B, groups, Lp, s)
                  .transpose(0, 1, 3, 2)
                  .reshape(B, Gs, Lp)
                  .astype(dt))

    # ---- weights: polyphase permutation + padding ---------------------------
    # column c = r*k2 + j  <->  original tap k = j*s + r   (zero beyond K)
    wk = jnp.pad(filters.astype(jnp.float32), ((0, 0), (0, s * k2 - K)))
    wp = wk.reshape(n_filt, k2, s).transpose(0, 2, 1).reshape(n_filt, c0)
    wp = jnp.pad(wp, ((0, 0), (0, c_pad - c0)))
    wp = jnp.pad(wp.reshape(groups, fg, c_pad),
                 ((0, 0), (0, fg_pad - fg), (0, 0)))
    wp = wp.reshape(groups * fg_pad, c_pad).astype(dt)

    # ---- VMEM budget (per grid step, double-buffered blocks) ----------------
    isz = jnp.dtype(dt).itemsize
    needed = (2 * Gs * (lt + hb) * isz            # x current + halo blocks
              + 2 * groups * fg_pad * c_pad * isz  # resident weight tile
              + 2 * groups * fg_pad * lt * 4       # output tile
              + c_pad * lt * 4                     # patches scratch
              + (2 << 20))                         # compiler headroom
    cap = 64 << 20                                 # v7x physical VMEM / core
    try:
        cap = int(pltpu.get_tpu_info().vmem_capacity_bytes)
    except Exception:
        pass
    vmem_limit = int(min(max(needed, 32 << 20), cap - (16 << 20)))

    kern = functools.partial(_sincconv_kernel, groups=groups, s=s, k2=k2,
                             fg_pad=fg_pad, c0=c0, c_pad=c_pad, lt=lt, dt=dt)

    out_pad = pl.pallas_call(
        kern,
        out_shape=jax.ShapeDtypeStruct((B, groups * fg_pad, l_out_pad), x.dtype),
        grid=(B, n_t),
        in_specs=[
            # current output tile of every (group, phase) row
            pl.BlockSpec((1, Gs, lt), lambda b, t: (b, 0, t)),
            # halo: the hb columns immediately after the tile (same array)
            pl.BlockSpec((1, Gs, hb), lambda b, t: (b, 0, (t + 1) * ratio)),
            # filters: whole tile resident across the grid
            pl.BlockSpec((groups * fg_pad, c_pad), lambda b, t: (0, 0)),
        ],
        out_specs=pl.BlockSpec((1, groups * fg_pad, lt),
                               lambda b, t: (b, 0, t)),
        scratch_shapes=[pltpu.VMEM((c_pad, lt), jnp.float32)],
        compiler_params=pltpu.CompilerParams(
            dimension_semantics=("parallel", "parallel"),
            vmem_limit_bytes=vmem_limit),
    )(x_ph, x_ph, wp)

    # Strip filter-row and time padding; merge (groups, fg) -> N_filt.
    out = (out_pad.reshape(B, groups, fg_pad, l_out_pad)[:, :, :fg, :l_out]
                  .reshape(B, n_filt, l_out))
    return out


# ---------------------- filter synthesis (parameter setup) ----------------- #

def init_sinc_params(n_filt, fs):
    """Deterministic init identical to SincConv1d.__init__ (mel-spaced)."""
    low_freq_mel = 80.0
    high_freq_mel = 2595.0 * np.log10(1.0 + fs / 2.0 / 700.0)
    mel_points = np.linspace(low_freq_mel, high_freq_mel, n_filt)
    f_cos = 700.0 * (10.0 ** (mel_points / 2595.0) - 1.0)
    b1 = np.roll(f_cos, 1)
    b2 = np.roll(f_cos, -1)
    b1[0] = 30.0
    b2[-1] = fs / 2.0 - 100.0
    filt_b1 = jnp.asarray(b1 / fs, dtype=jnp.float32)
    filt_band = jnp.asarray((b2 - b1) / fs, dtype=jnp.float32)
    return filt_b1, filt_band


def build_sinc_filters(filt_b1, filt_band, n_filt, filt_dim, fs):
    """Vectorized equivalent of the per-filter loop in SincConv1d.forward."""
    N = filt_dim
    freq_scale = float(fs)
    min_freq, min_band = 50.0, 50.0
    filt_beg = jnp.abs(filt_b1) + min_freq / freq_scale
    filt_end = filt_beg + (jnp.abs(filt_band) + min_band / freq_scale)

    M = int((N - 1) / 2)
    t_right = jnp.linspace(1.0, (N - 1) / 2.0, M, dtype=jnp.float32) / fs
    n = jnp.linspace(0.0, float(N), N, dtype=jnp.float32)
    window = 0.54 - 0.46 * jnp.cos(2.0 * math.pi * n / N)

    def sinc_bank(f_norm):
        band = f_norm[:, None] * freq_scale
        arg = 2.0 * math.pi * band * t_right[None, :]
        y_right = jnp.sin(arg) / arg
        y_left = jnp.flip(y_right, axis=1)
        ones = jnp.ones((f_norm.shape[0], 1), jnp.float32)
        return jnp.concatenate([y_left, ones, y_right], axis=1)

    lp1 = 2.0 * filt_beg[:, None] * sinc_bank(filt_beg)
    lp2 = 2.0 * filt_end[:, None] * sinc_bank(filt_end)
    band_pass = lp2 - lp1
    band_pass = band_pass / jnp.max(band_pass, axis=1, keepdims=True)
    return (band_pass * window[None, :]).astype(jnp.float32)    # (N_filt, K)


# --------------------------------- main ------------------------------------ #

if __name__ == "__main__":
    def run_case(N_filt, Filt_dim, fs, strides, groups, B, L, seed):
        filt_b1, filt_band = init_sinc_params(N_filt, fs)
        filters = build_sinc_filters(filt_b1, filt_band, N_filt, Filt_dim, fs)

        key = jax.random.PRNGKey(seed)
        x = jax.random.normal(key, (B, groups, L), dtype=jnp.float32)

        out = sinc_conv1d(x, filters, strides=strides, groups=groups)
        out = jax.block_until_ready(out)

        # Host reference on the same bf16-quantized operands (kernel default
        # uses bf16 operands with f32 accumulation).
        xq = np.asarray(x.astype(jnp.bfloat16).astype(jnp.float32))
        wq = np.asarray(filters.astype(jnp.bfloat16).astype(jnp.float32))
        fg = N_filt // groups
        l_out = (L - Filt_dim) // strides + 1
        ref = np.zeros((B, N_filt, l_out), np.float32)
        for f in range(N_filt):
            g = f // fg
            for k in range(Filt_dim):
                sl = xq[:, g, k:k + l_out * strides:strides][:, :l_out]
                ref[:, f, :] += sl * wq[f, k]

        out_np = np.asarray(out)
        assert out.shape == (B, N_filt, l_out), out.shape
        err = float(np.max(np.abs(out_np - ref)))
        assert np.allclose(out_np, ref, atol=2e-2, rtol=2e-2), err

    # strided, grouped config (2 time tiles, polyphase path)
    run_case(N_filt=8, Filt_dim=17, fs=16000, strides=2, groups=2,
             B=2, L=1200, seed=0)
    # canonical stride-1, single-group config (B=1 -> exercises the
    # "keep >= 2 grid steps" tile adjustment and the no-polyphase fast path)
    run_case(N_filt=6, Filt_dim=31, fs=16000, strides=1, groups=1,
             B=1, L=400, seed=1)

    print("KERNEL_OK")
</pallas_src>

<mosaic_0001>
module attributes {stable_mosaic.version = 11 : i64} {
  func.func @_sincconv_kernel(%arg0: i32, %arg1: i32, %arg2: memref<1x4x384xbf16, #tpu.memory_space<vmem>>, %arg3: memref<1x4x128xbf16, #tpu.memory_space<vmem>>, %arg4: memref<16x24xbf16, #tpu.memory_space<vmem>>, %arg5: memref<1x16x384xf32, #tpu.memory_space<vmem>>, %arg6: memref<24x384xf32, #tpu.memory_space<vmem>>) attributes {dimension_semantics = [#tpu.dimension_semantics<parallel>, #tpu.dimension_semantics<parallel>], iteration_bounds = array<i64: 2, 2>, scalar_prefetch = 0 : i64, scratch_operands = 1 : i64, tpu.core_type = #tpu.core_type<tc>, window_params = [{transform_indices = @transform_0, window_bounds = array<i64: 1, 4, 384>}, {transform_indices = @transform_1, window_bounds = array<i64: 1, 4, 128>}, {pipeline_mode = #tpu.pipeline_mode<synchronous>, transform_indices = @transform_2, window_bounds = array<i64: 16, 24>}, {transform_indices = @transform_3, window_bounds = array<i64: 1, 16, 384>}]} {
    %cst = arith.constant 0.000000e+00 : f32
    %0 = vector.broadcast %cst : f32 to vector<6x384xf32>
    %c18 = arith.constant 18 : index
    %c0 = arith.constant 0 : index
    %1 = vector.load %arg6[%c18, %c0] : memref<24x384xf32, #tpu.memory_space<vmem>>, vector<6x384xf32>
    tpu.vector_store %arg6[%c18, %c0], %0 {strides = array<i32>} : memref<24x384xf32, #tpu.memory_space<vmem>>, vector<6x384xf32>,
    %c0_0 = arith.constant 0 : index
    %c0_1 = arith.constant 0 : index
    %c0_2 = arith.constant 0 : index
    %2 = vector.load %arg2[%c0_0, %c0_1, %c0_2] : memref<1x4x384xbf16, #tpu.memory_space<vmem>>, vector<1x1x384xbf16>
    %3 = vector.shape_cast %2 : vector<1x1x384xbf16> to vector<1x384xbf16>
    %c0_3 = arith.constant 0 : index
    %c0_4 = arith.constant 0 : index
    %c0_5 = arith.constant 0 : index
    %4 = vector.load %arg3[%c0_3, %c0_4, %c0_5] : memref<1x4x128xbf16, #tpu.memory_space<vmem>>, vector<1x1x128xbf16>
    %5 = vector.shape_cast %4 : vector<1x1x128xbf16> to vector<1x128xbf16>
    %6 = tpu.concatenate %3, %5 in 1 : vector<1x384xbf16>, vector<1x128xbf16> -> vector<1x512xbf16>
    %7 = arith.extf %6 : vector<1x512xbf16> to vector<1x512xf32>
    %8 = vector.extract_strided_slice %7 {offsets = [0, 0], sizes = [1, 384], strides = [1, 1]} : vector<1x512xf32> to vector<1x384xf32>
    %c0_6 = arith.constant 0 : index
    %c0_7 = arith.constant 0 : index
    %9 = vector.load %arg6[%c0_6, %c0_7] : memref<24x384xf32, #tpu.memory_space<vmem>>, vector<1x384xf32>
    tpu.vector_store %arg6[%c0_6, %c0_7], %8 {strides = array<i32>} : memref<24x384xf32, #tpu.memory_space<vmem>>, vector<1x384xf32>,
    %10 = vector.extract_strided_slice %7 {offsets = [0, 1], sizes = [1, 384], strides = [1, 1]} : vector<1x512xf32> to vector<1x384xf32>
    %c1 = arith.constant 1 : index
    %c0_8 = arith.constant 0 : index
    %11 = vector.load %arg6[%c1, %c0_8] : memref<24x384xf32, #tpu.memory_space<vmem>>, vector<1x384xf32>
    tpu.vector_store %arg6[%c1, %c0_8], %10 {strides = array<i32>} : memref<24x384xf32, #tpu.memory_space<vmem>>, vector<1x384xf32>,
    %12 = vector.extract_strided_slice %7 {offsets = [0, 2], sizes = [1, 384], strides = [1, 1]} : vector<1x512xf32> to vector<1x384xf32>
    %c2 = arith.constant 2 : index
    %c0_9 = arith.constant 0 : index
    %13 = vector.load %arg6[%c2, %c0_9] : memref<24x384xf32, #tpu.memory_space<vmem>>, vector<1x384xf32>
    tpu.vector_store %arg6[%c2, %c0_9], %12 {strides = array<i32>} : memref<24x384xf32, #tpu.memory_space<vmem>>, vector<1x384xf32>,
    %14 = vector.extract_strided_slice %7 {offsets = [0, 3], sizes = [1, 384], strides = [1, 1]} : vector<1x512xf32> to vector<1x384xf32>
    %c3 = arith.constant 3 : index
    %c0_10 = arith.constant 0 : index
    %15 = vector.load %arg6[%c3, %c0_10] : memref<24x384xf32, #tpu.memory_space<vmem>>, vector<1x384xf32>
    tpu.vector_store %arg6[%c3, %c0_10], %14 {strides = array<i32>} : memref<24x384xf32, #tpu.memory_space<vmem>>, vector<1x384xf32>,
    %16 = vector.extract_strided_slice %7 {offsets = [0, 4], sizes = [1, 384], strides = [1, 1]} : vector<1x512xf32> to vector<1x384xf32>
    %c4 = arith.constant 4 : index
    %c0_11 = arith.constant 0 : index
    %17 = vector.load %arg6[%c4, %c0_11] : memref<24x384xf32, #tpu.memory_space<vmem>>, vector<1x384xf32>
    tpu.vector_store %arg6[%c4, %c0_11], %16 {strides = array<i32>} : memref<24x384xf32, #tpu.memory_space<vmem>>, vector<1x384xf32>,
    %18 = vector.extract_strided_slice %7 {offsets = [0, 5], sizes = [1, 384], strides = [1, 1]} : vector<1x512xf32> to vector<1x384xf32>
    %c5 = arith.constant 5 : index
    %c0_12 = arith.constant 0 : index
    %19 = vector.load %arg6[%c5, %c0_12] : memref<24x384xf32, #tpu.memory_space<vmem>>, vector<1x384xf32>
    tpu.vector_store %arg6[%c5, %c0_12], %18 {strides = array<i32>} : memref<24x384xf32, #tpu.memory_space<vmem>>, vector<1x384xf32>,
    %20 = vector.extract_strided_slice %7 {offsets = [0, 6], sizes = [1, 384], strides = [1, 1]} : vector<1x512xf32> to vector<1x384xf32>
    %c6 = arith.constant 6 : index
    %c0_13 = arith.constant 0 : index
    %21 = vector.load %arg6[%c6, %c0_13] : memref<24x384xf32, #tpu.memory_space<vmem>>, vector<1x384xf32>
    tpu.vector_store %arg6[%c6, %c0_13], %20 {strides = array<i32>} : memref<24x384xf32, #tpu.memory_space<vmem>>, vector<1x384xf32>,
    %22 = vector.extract_strided_slice %7 {offsets = [0, 7], sizes = [1, 384], strides = [1, 1]} : vector<1x512xf32> to vector<1x384xf32>
    %c7 = arith.constant 7 : index
    %c0_14 = arith.constant 0 : index
    %23 = vector.load %arg6[%c7, %c0_14] : memref<24x384xf32, #tpu.memory_space<vmem>>, vector<1x384xf32>
    tpu.vector_store %arg6[%c7, %c0_14], %22 {strides = array<i32>} : memref<24x384xf32, #tpu.memory_space<vmem>>, vector<1x384xf32>,
    %24 = vector.extract_strided_slice %7 {offsets = [0, 8], sizes = [1, 384], strides = [1, 1]} : vector<1x512xf32> to vector<1x384xf32>
    %c8 = arith.constant 8 : index
    %c0_15 = arith.constant 0 : index
    %25 = vector.load %arg6[%c8, %c0_15] : memref<24x384xf32, #tpu.memory_space<vmem>>, vector<1x384xf32>
    tpu.vector_store %arg6[%c8, %c0_15], %24 {strides = array<i32>} : memref<24x384xf32, #tpu.memory_space<vmem>>, vector<1x384xf32>,
    %c0_16 = arith.constant 0 : index
    %c1_17 = arith.constant 1 : index
    %c0_18 = arith.constant 0 : index
    %26 = vector.load %arg2[%c0_16, %c1_17, %c0_18] : memref<1x4x384xbf16, #tpu.memory_space<vmem>>, vector<1x1x384xbf16>
    %27 = vector.shape_cast %26 : vector<1x1x384xbf16> to vector<1x384xbf16>
    %c0_19 = arith.constant 0 : index
    %c1_20 = arith.constant 1 : index
    %c0_21 = arith.constant 0 : index
    %28 = vector.load %arg3[%c0_19, %c1_20, %c0_21] : memref<1x4x128xbf16, #tpu.memory_space<vmem>>, vector<1x1x128xbf16>
    %29 = vector.shape_cast %28 : vector<1x1x128xbf16> to vector<1x128xbf16>
    %30 = tpu.concatenate %27, %29 in 1 : vector<1x384xbf16>, vector<1x128xbf16> -> vector<1x512xbf16>
    %31 = arith.extf %30 : vector<1x512xbf16> to vector<1x512xf32>
    %32 = vector.extract_strided_slice %31 {offsets = [0, 0], sizes = [1, 384], strides = [1, 1]} : vector<1x512xf32> to vector<1x384xf32>
    %c9 = arith.constant 9 : index
    %c0_22 = arith.constant 0 : index
    %33 = vector.load %arg6[%c9, %c0_22] : memref<24x384xf32, #tpu.memory_space<vmem>>, vector<1x384xf32>
    tpu.vector_store %arg6[%c9, %c0_22], %32 {strides = array<i32>} : memref<24x384xf32, #tpu.memory_space<vmem>>, vector<1x384xf32>,
    %34 = vector.extract_strided_slice %31 {offsets = [0, 1], sizes = [1, 384], strides = [1, 1]} : vector<1x512xf32> to vector<1x384xf32>
    %c10 = arith.constant 10 : index
    %c0_23 = arith.constant 0 : index
    %35 = vector.load %arg6[%c10, %c0_23] : memref<24x384xf32, #tpu.memory_space<vmem>>, vector<1x384xf32>
    tpu.vector_store %arg6[%c10, %c0_23], %34 {strides = array<i32>} : memref<24x384xf32, #tpu.memory_space<vmem>>, vector<1x384xf32>,
    %36 = vector.extract_strided_slice %31 {offsets = [0, 2], sizes = [1, 384], strides = [1, 1]} : vector<1x512xf32> to vector<1x384xf32>
    %c11 = arith.constant 11 : index
    %c0_24 = arith.constant 0 : index
    %37 = vector.load %arg6[%c11, %c0_24] : memref<24x384xf32, #tpu.memory_space<vmem>>, vector<1x384xf32>
    tpu.vector_store %arg6[%c11, %c0_24], %36 {strides = array<i32>} : memref<24x384xf32, #tpu.memory_space<vmem>>, vector<1x384xf32>,
    %38 = vector.extract_strided_slice %31 {offsets = [0, 3], sizes = [1, 384], strides = [1, 1]} : vector<1x512xf32> to vector<1x384xf32>
    %c12 = arith.constant 12 : index
    %c0_25 = arith.constant 0 : index
    %39 = vector.load %arg6[%c12, %c0_25] : memref<24x384xf32, #tpu.memory_space<vmem>>, vector<1x384xf32>
    tpu.vector_store %arg6[%c12, %c0_25], %38 {strides = array<i32>} : memref<24x384xf32, #tpu.memory_space<vmem>>, vector<1x384xf32>,
    %40 = vector.extract_strided_slice %31 {offsets = [0, 4], sizes = [1, 384], strides = [1, 1]} : vector<1x512xf32> to vector<1x384xf32>
    %c13 = arith.constant 13 : index
    %c0_26 = arith.constant 0 : index
    %41 = vector.load %arg6[%c13, %c0_26] : memref<24x384xf32, #tpu.memory_space<vmem>>, vector<1x384xf32>
    tpu.vector_store %arg6[%c13, %c0_26], %40 {strides = array<i32>} : memref<24x384xf32, #tpu.memory_space<vmem>>, vector<1x384xf32>,
    %42 = vector.extract_strided_slice %31 {offsets = [0, 5], sizes = [1, 384], strides = [1, 1]} : vector<1x512xf32> to vector<1x384xf32>
    %c14 = arith.constant 14 : index
    %c0_27 = arith.constant 0 : index
    %43 = vector.load %arg6[%c14, %c0_27] : memref<24x384xf32, #tpu.memory_space<vmem>>, vector<1x384xf32>
    tpu.vector_store %arg6[%c14, %c0_27], %42 {strides = array<i32>} : memref<24x384xf32, #tpu.memory_space<vmem>>, vector<1x384xf32>,
    %44 = vector.extract_strided_slice %31 {offsets = [0, 6], sizes = [1, 384], strides = [1, 1]} : vector<1x512xf32> to vector<1x384xf32>
    %c15 = arith.constant 15 : index
    %c0_28 = arith.constant 0 : index
    %45 = vector.load %arg6[%c15, %c0_28] : memref<24x384xf32, #tpu.memory_space<vmem>>, vector<1x384xf32>
    tpu.vector_store %arg6[%c15, %c0_28], %44 {strides = array<i32>} : memref<24x384xf32, #tpu.memory_space<vmem>>, vector<1x384xf32>,
    %46 = vector.extract_strided_slice %31 {offsets = [0, 7], sizes = [1, 384], strides = [1, 1]} : vector<1x512xf32> to vector<1x384xf32>
    %c16 = arith.constant 16 : index
    %c0_29 = arith.constant 0 : index
    %47 = vector.load %arg6[%c16, %c0_29] : memref<24x384xf32, #tpu.memory_space<vmem>>, vector<1x384xf32>
    tpu.vector_store %arg6[%c16, %c0_29], %46 {strides = array<i32>} : memref<24x384xf32, #tpu.memory_space<vmem>>, vector<1x384xf32>,
    %48 = vector.extract_strided_slice %31 {offsets = [0, 8], sizes = [1, 384], strides = [1, 1]} : vector<1x512xf32> to vector<1x384xf32>
    %c17 = arith.constant 17 : index
    %c0_30 = arith.constant 0 : index
    %49 = vector.load %arg6[%c17, %c0_30] : memref<24x384xf32, #tpu.memory_space<vmem>>, vector<1x384xf32>
    tpu.vector_store %arg6[%c17, %c0_30], %48 {strides = array<i32>} : memref<24x384xf32, #tpu.memory_space<vmem>>, vector<1x384xf32>,
    %c0_31 = arith.constant 0 : index
    %c0_32 = arith.constant 0 : index
    %50 = vector.load %arg4[%c0_31, %c0_32] : memref<16x24xbf16, #tpu.memory_space<vmem>>, vector<8x24xbf16>
    %c0_33 = arith.constant 0 : index
    %c0_34 = arith.constant 0 : index
    %51 = vector.load %arg6[%c0_33, %c0_34] : memref<24x384xf32, #tpu.memory_space<vmem>>, vector<24x384xf32>
    %52 = arith.truncf %51 : vector<24x384xf32> to vector<24x384xbf16>
    %cst_35 = arith.constant dense<0.000000e+00> : vector<8x384xf32>
    %53 = tpu.matmul %50, %52, %cst_35 {dimension_numbers = #tpu.dot_dimension_numbers<[1], [0], [0], [1], [0, 0, 1, 1], [], []>} : vector<8x24xbf16>, vector<24x384xbf16>, vector<8x384xf32> -> vector<8x384xf32>
    %c0_36 = arith.constant 0 : index
    %c2_37 = arith.constant 2 : index
    %c0_38 = arith.constant 0 : index
    %54 = vector.load %arg2[%c0_36, %c2_37, %c0_38] : memref<1x4x384xbf16, #tpu.memory_space<vmem>>, vector<1x1x384xbf16>
    %55 = vector.shape_cast %54 : vector<1x1x384xbf16> to vector<1x384xbf16>
    %c0_39 = arith.constant 0 : index
    %c2_40 = arith.constant 2 : index
    %c0_41 = arith.constant 0 : index
    %56 = vector.load %arg3[%c0_39, %c2_40, %c0_41] : memref<1x4x128xbf16, #tpu.memory_space<vmem>>, vector<1x1x128xbf16>
    %57 = vector.shape_cast %56 : vector<1x1x128xbf16> to vector<1x128xbf16>
    %58 = tpu.concatenate %55, %57 in 1 : vector<1x384xbf16>, vector<1x128xbf16> -> vector<1x512xbf16>
    %59 = arith.extf %58 : vector<1x512xbf16> to vector<1x512xf32>
    %60 = vector.extract_strided_slice %59 {offsets = [0, 0], sizes = [1, 384], strides = [1, 1]} : vector<1x512xf32> to vector<1x384xf32>
    %c0_42 = arith.constant 0 : index
    %c0_43 = arith.constant 0 : index
    %61 = vector.load %arg6[%c0_42, %c0_43] : memref<24x384xf32, #tpu.memory_space<vmem>>, vector<1x384xf32>
    tpu.vector_store %arg6[%c0_42, %c0_43], %60 {strides = array<i32>} : memref<24x384xf32, #tpu.memory_space<vmem>>, vector<1x384xf32>,
    %62 = vector.extract_strided_slice %59 {offsets = [0, 1], sizes = [1, 384], strides = [1, 1]} : vector<1x512xf32> to vector<1x384xf32>
    %c1_44 = arith.constant 1 : index
    %c0_45 = arith.constant 0 : index
    %63 = vector.load %arg6[%c1_44, %c0_45] : memref<24x384xf32, #tpu.memory_space<vmem>>, vector<1x384xf32>
    tpu.vector_store %arg6[%c1_44, %c0_45], %62 {strides = array<i32>} : memref<24x384xf32, #tpu.memory_space<vmem>>, vector<1x384xf32>,
    %64 = vector.extract_strided_slice %59 {offsets = [0, 2], sizes = [1, 384], strides = [1, 1]} : vector<1x512xf32> to vector<1x384xf32>
    %c2_46 = arith.constant 2 : index
    %c0_47 = arith.constant 0 : index
    %65 = vector.load %arg6[%c2_46, %c0_47] : memref<24x384xf32, #tpu.memory_space<vmem>>, vector<1x384xf32>
    tpu.vector_store %arg6[%c2_46, %c0_47], %64 {strides = array<i32>} : memref<24x384xf32, #tpu.memory_space<vmem>>, vector<1x384xf32>,
    %66 = vector.extract_strided_slice %59 {offsets = [0, 3], sizes = [1, 384], strides = [1, 1]} : vector<1x512xf32> to vector<1x384xf32>
    %c3_48 = arith.constant 3 : index
    %c0_49 = arith.constant 0 : index
    %67 = vector.load %arg6[%c3_48, %c0_49] : memref<24x384xf32, #tpu.memory_space<vmem>>, vector<1x384xf32>
    tpu.vector_store %arg6[%c3_48, %c0_49], %66 {strides = array<i32>} : memref<24x384xf32, #tpu.memory_space<vmem>>, vector<1x384xf32>,
    %68 = vector.extract_strided_slice %59 {offsets = [0, 4], sizes = [1, 384], strides = [1, 1]} : vector<1x512xf32> to vector<1x384xf32>
    %c4_50 = arith.constant 4 : index
    %c0_51 = arith.constant 0 : index
    %69 = vector.load %arg6[%c4_50, %c0_51] : memref<24x384xf32, #tpu.memory_space<vmem>>, vector<1x384xf32>
    tpu.vector_store %arg6[%c4_50, %c0_51], %68 {strides = array<i32>} : memref<24x384xf32, #tpu.memory_space<vmem>>, vector<1x384xf32>,
    %70 = vector.extract_strided_slice %59 {offsets = [0, 5], sizes = [1, 384], strides = [1, 1]} : vector<1x512xf32> to vector<1x384xf32>
    %c5_52 = arith.constant 5 : index
    %c0_53 = arith.constant 0 : index
    %71 = vector.load %arg6[%c5_52, %c0_53] : memref<24x384xf32, #tpu.memory_space<vmem>>, vector<1x384xf32>
    tpu.vector_store %arg6[%c5_52, %c0_53], %70 {strides = array<i32>} : memref<24x384xf32, #tpu.memory_space<vmem>>, vector<1x384xf32>,
    %72 = vector.extract_strided_slice %59 {offsets = [0, 6], sizes = [1, 384], strides = [1, 1]} : vector<1x512xf32> to vector<1x384xf32>
    %c6_54 = arith.constant 6 : index
    %c0_55 = arith.constant 0 : index
    %73 = vector.load %arg6[%c6_54, %c0_55] : memref<24x384xf32, #tpu.memory_space<vmem>>, vector<1x384xf32>
    tpu.vector_store %arg6[%c6_54, %c0_55], %72 {strides = array<i32>} : memref<24x384xf32, #tpu.memory_space<vmem>>, vector<1x384xf32>,
    %74 = vector.extract_strided_slice %59 {offsets = [0, 7], sizes = [1, 384], strides = [1, 1]} : vector<1x512xf32> to vector<1x384xf32>
    %c7_56 = arith.constant 7 : index
    %c0_57 = arith.constant 0 : index
    %75 = vector.load %arg6[%c7_56, %c0_57] : memref<24x384xf32, #tpu.memory_space<vmem>>, vector<1x384xf32>
    tpu.vector_store %arg6[%c7_56, %c0_57], %74 {strides = array<i32>} : memref<24x384xf32, #tpu.memory_space<vmem>>, vector<1x384xf32>,
    %76 = vector.extract_strided_slice %59 {offsets = [0, 8], sizes = [1, 384], strides = [1, 1]} : vector<1x512xf32> to vector<1x384xf32>
    %c8_58 = arith.constant 8 : index
    %c0_59 = arith.constant 0 : index
    %77 = vector.load %arg6[%c8_58, %c0_59] : memref<24x384xf32, #tpu.memory_space<vmem>>, vector<1x384xf32>
    tpu.vector_store %arg6[%c8_58, %c0_59], %76 {strides = array<i32>} : memref<24x384xf32, #tpu.memory_space<vmem>>, vector<1x384xf32>,
    %c0_60 = arith.constant 0 : index
    %c3_61 = arith.constant 3 : index
    %c0_62 = arith.constant 0 : index
    %78 = vector.load %arg2[%c0_60, %c3_61, %c0_62] : memref<1x4x384xbf16, #tpu.memory_space<vmem>>, vector<1x1x384xbf16>
    %79 = vector.shape_cast %78 : vector<1x1x384xbf16> to vector<1x384xbf16>
    %c0_63 = arith.constant 0 : index
    %c3_64 = arith.constant 3 : index
    %c0_65 = arith.constant 0 : index
    %80 = vector.load %arg3[%c0_63, %c3_64, %c0_65] : memref<1x4x128xbf16, #tpu.memory_space<vmem>>, vector<1x1x128xbf16>
    %81 = vector.shape_cast %80 : vector<1x1x128xbf16> to vector<1x128xbf16>
    %82 = tpu.concatenate %79, %81 in 1 : vector<1x384xbf16>, vector<1x128xbf16> -> vector<1x512xbf16>
    %83 = arith.extf %82 : vector<1x512xbf16> to vector<1x512xf32>
    %84 = vector.extract_strided_slice %83 {offsets = [0, 0], sizes = [1, 384], strides = [1, 1]} : vector<1x512xf32> to vector<1x384xf32>
    %c9_66 = arith.constant 9 : index
    %c0_67 = arith.constant 0 : index
    %85 = vector.load %arg6[%c9_66, %c0_67] : memref<24x384xf32, #tpu.memory_space<vmem>>, vector<1x384xf32>
    tpu.vector_store %arg6[%c9_66, %c0_67], %84 {strides = array<i32>} : memref<24x384xf32, #tpu.memory_space<vmem>>, vector<1x384xf32>,
    %86 = vector.extract_strided_slice %83 {offsets = [0, 1], sizes = [1, 384], strides = [1, 1]} : vector<1x512xf32> to vector<1x384xf32>
    %c10_68 = arith.constant 10 : index
    %c0_69 = arith.constant 0 : index
    %87 = vector.load %arg6[%c10_68, %c0_69] : memref<24x384xf32, #tpu.memory_space<vmem>>, vector<1x384xf32>
    tpu.vector_store %arg6[%c10_68, %c0_69], %86 {strides = array<i32>} : memref<24x384xf32, #tpu.memory_space<vmem>>, vector<1x384xf32>,
    %88 = vector.extract_strided_slice %83 {offsets = [0, 2], sizes = [1, 384], strides = [1, 1]} : vector<1x512xf32> to vector<1x384xf32>
    %c11_70 = arith.constant 11 : index
    %c0_71 = arith.constant 0 : index
    %89 = vector.load %arg6[%c11_70, %c0_71] : memref<24x384xf32, #tpu.memory_space<vmem>>, vector<1x384xf32>
    tpu.vector_store %arg6[%c11_70, %c0_71], %88 {strides = array<i32>} : memref<24x384xf32, #tpu.memory_space<vmem>>, vector<1x384xf32>,
    %90 = vector.extract_strided_slice %83 {offsets = [0, 3], sizes = [1, 384], strides = [1, 1]} : vector<1x512xf32> to vector<1x384xf32>
    %c12_72 = arith.constant 12 : index
    %c0_73 = arith.constant 0 : index
    %91 = vector.load %arg6[%c12_72, %c0_73] : memref<24x384xf32, #tpu.memory_space<vmem>>, vector<1x384xf32>
    tpu.vector_store %arg6[%c12_72, %c0_73], %90 {strides = array<i32>} : memref<24x384xf32, #tpu.memory_space<vmem>>, vector<1x384xf32>,
    %92 = vector.extract_strided_slice %83 {offsets = [0, 4], sizes = [1, 384], strides = [1, 1]} : vector<1x512xf32> to vector<1x384xf32>
    %c13_74 = arith.constant 13 : index
    %c0_75 = arith.constant 0 : index
    %93 = vector.load %arg6[%c13_74, %c0_75] : memref<24x384xf32, #tpu.memory_space<vmem>>, vector<1x384xf32>
    tpu.vector_store %arg6[%c13_74, %c0_75], %92 {strides = array<i32>} : memref<24x384xf32, #tpu.memory_space<vmem>>, vector<1x384xf32>,
    %94 = vector.extract_strided_slice %83 {offsets = [0, 5], sizes = [1, 384], strides = [1, 1]} : vector<1x512xf32> to vector<1x384xf32>
    %c14_76 = arith.constant 14 : index
    %c0_77 = arith.constant 0 : index
    %95 = vector.load %arg6[%c14_76, %c0_77] : memref<24x384xf32, #tpu.memory_space<vmem>>, vector<1x384xf32>
    tpu.vector_store %arg6[%c14_76, %c0_77], %94 {strides = array<i32>} : memref<24x384xf32, #tpu.memory_space<vmem>>, vector<1x384xf32>,
    %96 = vector.extract_strided_slice %83 {offsets = [0, 6], sizes = [1, 384], strides = [1, 1]} : vector<1x512xf32> to vector<1x384xf32>
    %c15_78 = arith.constant 15 : index
    %c0_79 = arith.constant 0 : index
    %97 = vector.load %arg6[%c15_78, %c0_79] : memref<24x384xf32, #tpu.memory_space<vmem>>, vector<1x384xf32>
    tpu.vector_store %arg6[%c15_78, %c0_79], %96 {strides = array<i32>} : memref<24x384xf32, #tpu.memory_space<vmem>>, vector<1x384xf32>,
    %98 = vector.extract_strided_slice %83 {offsets = [0, 7], sizes = [1, 384], strides = [1, 1]} : vector<1x512xf32> to vector<1x384xf32>
    %c16_80 = arith.constant 16 : index
    %c0_81 = arith.constant 0 : index
    %99 = vector.load %arg6[%c16_80, %c0_81] : memref<24x384xf32, #tpu.memory_space<vmem>>, vector<1x384xf32>
    tpu.vector_store %arg6[%c16_80, %c0_81], %98 {strides = array<i32>} : memref<24x384xf32, #tpu.memory_space<vmem>>, vector<1x384xf32>,
    %100 = vector.extract_strided_slice %83 {offsets = [0, 8], sizes = [1, 384], strides = [1, 1]} : vector<1x512xf32> to vector<1x384xf32>
    %c17_82 = arith.constant 17 : index
    %c0_83 = arith.constant 0 : index
    %101 = vector.load %arg6[%c17_82, %c0_83] : memref<24x384xf32, #tpu.memory_space<vmem>>, vector<1x384xf32>
    tpu.vector_store %arg6[%c17_82, %c0_83], %100 {strides = array<i32>} : memref<24x384xf32, #tpu.memory_space<vmem>>, vector<1x384xf32>,
    %c8_84 = arith.constant 8 : index
    %c0_85 = arith.constant 0 : index
    %102 = vector.load %arg4[%c8_84, %c0_85] : memref<16x24xbf16, #tpu.memory_space<vmem>>, vector<8x24xbf16>
    %c0_86 = arith.constant 0 : index
    %c0_87 = arith.constant 0 : index
    %103 = vector.load %arg6[%c0_86, %c0_87] : memref<24x384xf32, #tpu.memory_space<vmem>>, vector<24x384xf32>
    %104 = arith.truncf %103 : vector<24x384xf32> to vector<24x384xbf16>
    %cst_88 = arith.constant dense<0.000000e+00> : vector<8x384xf32>
    %105 = tpu.matmul %102, %104, %cst_88 {dimension_numbers = #tpu.dot_dimension_numbers<[1], [0], [0], [1], [0, 0, 1, 1], [], []>} : vector<8x24xbf16>, vector<24x384xbf16>, vector<8x384xf32> -> vector<8x384xf32>
    %106 = tpu.concatenate %53, %105 in 0 : vector<8x384xf32>, vector<8x384xf32> -> vector<16x384xf32>
    %c0_89 = arith.constant 0 : index
    %c0_90 = arith.constant 0 : index
    %c0_91 = arith.constant 0 : index
    %107 = vector.load %arg5[%c0_89, %c0_90, %c0_91] : memref<1x16x384xf32, #tpu.memory_space<vmem>>, vector<1x16x384xf32>
    %108 = vector.shape_cast %107 : vector<1x16x384xf32> to vector<16x384xf32>
    %109 = vector.shape_cast %106 : vector<16x384xf32> to vector<1x16x384xf32>
    tpu.vector_store %arg5[%c0_89, %c0_90, %c0_91], %109 {strides = array<i32>} : memref<1x16x384xf32, #tpu.memory_space<vmem>>, vector<1x16x384xf32>,
    return
  }
  func.func @transform_0(%arg0: i32, %arg1: i32) -> (i32, i32, i32) {
    %c0_i32 = arith.constant 0 : i32
    %c0_i32_0 = arith.constant 0 : i32
    return %arg0, %c0_i32, %arg1 : i32, i32, i32
  }
  func.func @transform_1(%arg0: i32, %arg1: i32) -> (i32, i32, i32) {
    %c1_i32 = arith.constant 1 : i32
    %0 = arith.addi %arg1, %c1_i32 : i32
    %c3_i32 = arith.constant 3 : i32
    %1 = arith.muli %0, %c3_i32 : i32
    %c0_i32 = arith.constant 0 : i32
    %c0_i32_0 = arith.constant 0 : i32
    return %arg0, %c0_i32, %1 : i32, i32, i32
  }
  func.func @transform_2(%arg0: i32, %arg1: i32) -> (i32, i32) {
    %c0_i32 = arith.constant 0 : i32
    %c0_i32_0 = arith.constant 0 : i32
    %c0_i32_1 = arith.constant 0 : i32
    return %c0_i32, %c0_i32_0 : i32, i32
  }
  func.func @transform_3(%arg0: i32, %arg1: i32) -> (i32, i32, i32) {
    %c0_i32 = arith.constant 0 : i32
    %c0_i32_0 = arith.constant 0 : i32
    return %arg0, %c0_i32, %arg1 : i32, i32, i32
  }
}

</mosaic_0001>

<llo_original>
// kernel: tpu_custom_call.1
$region0: #{tpu_custom_call.1}
  #allocation0 [shape = 'u32[]', space=smem, size = 0x4, offset = 0x4, fixed_abs, tag = 'smem constant byte address 0x4 - core index']
  #allocation1 [shape = 'u32[144,128]{1,0:T(1,128)}', space=vmem, size = 0x12000, scoped, tag = 'internal scratch']
  #allocation2 [shape = 'f32[24,384]{1,0:T(8,128)}', space=vmem, size = 0x9000, scoped, tag = 'scratch operand']
  %s0 = inlined_call_operand.hbm [shape: bf16[2,4,896], index: 0, kind: input, shape index: {}]
  %s1 = inlined_call_operand.hbm [shape: bf16[2,4,896], index: 1, kind: input, shape index: {}]
  %s2 = inlined_call_operand.hbm [shape: bf16[16,24], index: 2, kind: input, shape index: {}]
  %s3 = inlined_call_operand.hbm [shape: f32[2,16,768], index: 3, kind: output, shape index: {}]
  %s4 = sld [smem:[#allocation0]]
  $region57: #{tpu_custom_call.1} parent=0
    _
  %s6 = ssub.s32 1, %s4
  %s7 = scalar_select 0, %s6, %s4
  $region1: #{tpu_custom_call.1} parent=0
    #allocation3 [shape = 'u8[6144]{0}', space=vmem, size = 0x1800, scoped, tag = 'input window, operand 0']
    #allocation4 [shape = 's32[2]{0}', space=sflag, size = 0x8, scoped, tag = 'scoped memory for tpu_custom_call.1']
    #allocation5 [shape = 's32[2]{0}', space=sflag, size = 0x8, scoped, tag = 'scoped memory for tpu_custom_call.1']
    #allocation6 [shape = 'u8[2048]{0}', space=vmem, size = 0x800, scoped, tag = 'input window, operand 1']
    #allocation7 [shape = 's32[2]{0}', space=sflag, size = 0x8, scoped, tag = 'scoped memory for tpu_custom_call.1']
    #allocation8 [shape = 'u8[4096]{0}', space=vmem, size = 0x1000, scoped, tag = 'input window, operand 2, single buffered']
    #allocation9 [shape = 'u8[49152]{0}', space=vmem, size = 0xc000, scoped, tag = 'output window, operand 0']
    %8 = vsyncpa [#allocation4], 0
    %s9 = scalar_lea.sflag [#allocation4], 1
    %10 = vsyncpa %s9, 0
    %11 = vsyncpa [#allocation7], 0
    %s12 = scalar_lea.sflag [#allocation7], 1
    %13 = vsyncpa %s12, 0
    %14 = vsyncpa [#allocation5], 0
    %s15 = scalar_lea.sflag [#allocation5], 1
    %16 = vsyncpa %s15, 0
    loop: start=0, step=1, limit=6
    $region2: #{tpu_custom_call.1} parent=1 // loop_pre_header
      _
    $region3: #{tpu_custom_call.1} parent=1 // loop_header
      %s18 = sphi 0, %s22
      %p19 = scmp.ge.s32.totalorder %s18, 6
      %s25 = sphi 0, %s37
      %s26 = sphi 0, %s33
      %s27 = sphi 0, %s25
      %s28 = sphi 0, %s26
      %s29 = sphi 0, %s27
      %s30 = sphi 0, %s28
      %s42 = sphi 0, %s44
      %s45 = sphi 0, %s42
      %s46 = sphi 0, %s45
      %s62 = sphi 0, %s46
      %s74 = sphi 0, %s76
      %s77 = sphi 0, %s74
      %s78 = sphi 0, %s77
      %s94 = sphi 0, %s78
      %s98 = sphi 0, %s98
      %s100 = sphi 0, %s98
      %s101 = sphi 0, %s100
      %s115 = sphi 0, %s101
      %s123 = sphi 0, %s125
      %s126 = sphi 0, %s123
      %s127 = sphi 0, %s126
      %s143 = sphi 0, %s127
    $region4: #{tpu_custom_call.1} parent=1 // loop_header_branch
      %21 = sbr.rel (%p19) target = $region8
    $region5: #{tpu_custom_call.1} parent=1 // loop_body
      %s23 = ssub.s32 %s18, 1
      %s24 = ssub.s32 %s18, 2
      %s31 = sadd.s32 1, %s26
      %p32 = scmp.ge.s32.totalorder %s31, 2
      %s33 = scalar_select %p32, 0, %s31
      %s34 = sadd.s32 1, %s25
      %s35 = scalar_select %p32, %s34, %s25
      %p36 = scmp.ge.s32.totalorder %s35, 2
      %s37 = scalar_select %p36, 0, %s35
      %s38 = ssub.s32 %s25, %s37
      %s39 = ssub.s32 %s26, %s33
      %s40 = sor.u32 %s38, %s39
      %p41 = scmp.eq.s32.totalorder %s40, 0
      %s43 = sadd.s32 %s42, 1
      %s44 = scalar_select %p41, %s42, %s43
      %p47 = pneg %p41
      %p48 = scmp.eq.s32.totalorder %s18, 3
      %p49 = por %p47, %p48
      %p50 = scmp.ne.s32.totalorder %s42, %s45
      %p51 = scmp.eq.s32.totalorder %s18, 0
      %p52 = por %p50, %p51
      %p53 = scmp.ne.s32.totalorder %s42, %s45
      %p54 = scmp.eq.s32.totalorder %s23, 3
      %p55 = por %p53, %p54
      %p56 = scmp.ne.s32.totalorder %s45, %s46
      %p57 = scmp.eq.s32.totalorder %s23, 0
      %p58 = por %p56, %p57
      %p59 = scmp.ne.s32.totalorder %s45, %s46
      %p60 = scmp.eq.s32.totalorder %s24, 3
      %p61 = por %p59, %p60
      %p63 = scmp.ne.s32.totalorder %s46, %s62
      %p64 = scmp.eq.s32.totalorder %s24, 0
      %p65 = por %p63, %p64
      %s66 = sadd.s32 %s26, 1
      %s67 = smul.u32 %s66, 3
      %s68 = sadd.s32 %s33, 1
      %s69 = smul.u32 %s68, 3
      %s70 = ssub.s32 %s25, %s37
      %s71 = ssub.s32 %s67, %s69
      %s72 = sor.u32 %s70, %s71
      %p73 = scmp.eq.s32.totalorder %s72, 0
      %s75 = sadd.s32 %s74, 1
      %s76 = scalar_select %p73, %s74, %s75
      %p79 = pneg %p73
      %p80 = scmp.eq.s32.totalorder %s18, 3
      %p81 = por %p79, %p80
      %p82 = scmp.ne.s32.totalorder %s74, %s77
      %p83 = scmp.eq.s32.totalorder %s18, 0
      %p84 = por %p82, %p83
      %p85 = scmp.ne.s32.totalorder %s74, %s77
      %p86 = scmp.eq.s32.totalorder %s23, 3
      %p87 = por %p85, %p86
      %p88 = scmp.ne.s32.totalorder %s77, %s78
      %p89 = scmp.eq.s32.totalorder %s23, 0
      %p90 = por %p88, %p89
      %p91 = scmp.ne.s32.totalorder %s77, %s78
      %p92 = scmp.eq.s32.totalorder %s24, 3
      %p93 = por %p91, %p92
      %p95 = scmp.ne.s32.totalorder %s78, %s94
      %p96 = scmp.eq.s32.totalorder %s24, 0
      %p97 = por %p95, %p96
      %s99 = sadd.s32 %s98, 1
      %p102 = scmp.eq.s32.totalorder %s18, 3
      %p103 = scmp.ne.s32.totalorder %s98, %s100
      %p104 = scmp.eq.s32.totalorder %s18, 0
      %p105 = por %p103, %p104
      %p106 = scmp.ne.s32.totalorder %s98, %s100
      %p107 = scmp.eq.s32.totalorder %s23, 3
      %p108 = por %p106, %p107
      %p109 = scmp.ne.s32.totalorder %s100, %s101
      %p110 = scmp.eq.s32.totalorder %s23, 0
      %p111 = por %p109, %p110
      %p112 = scmp.ne.s32.totalorder %s100, %s101
      %p113 = scmp.eq.s32.totalorder %s24, 3
      %p114 = por %p112, %p113
      %p116 = scmp.ne.s32.totalorder %s101, %s115
      %p117 = scmp.eq.s32.totalorder %s24, 0
      %p118 = por %p116, %p117
      %s119 = ssub.s32 %s25, %s37
      %s120 = ssub.s32 %s26, %s33
      %s121 = sor.u32 %s119, %s120
      %p122 = scmp.eq.s32.totalorder %s121, 0
      %s124 = sadd.s32 %s123, 1
      %s125 = scalar_select %p122, %s123, %s124
      %p128 = pneg %p122
      %p129 = scmp.eq.s32.totalorder %s18, 3
      %p130 = por %p128, %p129
      %p131 = scmp.ne.s32.totalorder %s123, %s126
      %p132 = scmp.eq.s32.totalorder %s18, 0
      %p133 = por %p131, %p132
      %p134 = scmp.ne.s32.totalorder %s123, %s126
      %p135 = scmp.eq.s32.totalorder %s23, 3
      %p136 = por %p134, %p135
      %p137 = scmp.ne.s32.totalorder %s126, %s127
      %p138 = scmp.eq.s32.totalorder %s23, 0
      %p139 = por %p137, %p138
      %p140 = scmp.ne.s32.totalorder %s126, %s127
      %p141 = scmp.eq.s32.totalorder %s24, 3
      %p142 = por %p140, %p141
      %p144 = scmp.ne.s32.totalorder %s127, %s143
      %p145 = scmp.eq.s32.totalorder %s24, 0
      %p146 = por %p144, %p145
      %p147 = scmp.le.s32.totalorder 1, %s18
      %p148 = scmp.lt.s32.totalorder %s18, 5
      %p149 = pnand %p147, %p148
      %p150 = pneg %p149
      // Predicated region
      $region9: #{tpu_custom_call.1} parent=5 // pred_check
        _
      $region10: #{tpu_custom_call.1} parent=5 // pred_check_branch
        %152 = sbr.rel (%p149) target = $region12
      $region11: #{tpu_custom_call.1} parent=5 // pred_region
        %s153 = ssub.s32 %s18, 1
        // Predicated region
        $region13: #{tpu_custom_call.1} parent=11 // pred_check
          %p154 = pneg %p111
        $region14: #{tpu_custom_call.1} parent=11 // pred_check_branch
          %156 = sbr.rel (%p154) target = $region16
        $region15: #{tpu_custom_call.1} parent=11 // pred_region
          %s158 = ssub.s32 128, 128
          %159 = vsyncadd [#allocation7], %s158
          %s160 = sshll.u32 [#allocation8], 4
          %s161 = int_to_ptr.vmem [resolvable:$true] %s160
          %166 = dma.hbm_to_vmem [thread:$0]  %s2, 128, %s161, [#allocation7], 64, 64, 4
        $region16: #{tpu_custom_call.1} parent=11 // pred_fallthru
          _
      $region12: #{tpu_custom_call.1} parent=5 // pred_fallthru
        _
      %p167 = scmp.lt.s32.totalorder %s18, 4
      // Predicated region
      $region17: #{tpu_custom_call.1} parent=5 // pred_check
        %p168 = pneg %p167
      $region18: #{tpu_custom_call.1} parent=5 // pred_check_branch
        %170 = sbr.rel (%p168) target = $region20
      $region19: #{tpu_custom_call.1} parent=5 // pred_region
        // Predicated region
        $region21: #{tpu_custom_call.1} parent=19 // pred_check
          %p171 = pneg %p52
        $region22: #{tpu_custom_call.1} parent=19 // pred_check_branch
          %173 = sbr.rel (%p171) target = $region24
        $region23: #{tpu_custom_call.1} parent=19 // pred_region
          %s174 = sand.u32 %s42, 1
          %s175 = scalar_lea.sflag [#allocation4], %s174
          %s176 = sand.u32 %s42, 1
          %s177 = smul.addr %s176, 6
          %s178 = scalar_lea.vmem [#allocation3], %s177
          %s179 = smul.u32 3, %s26
          %s180 = ssub.s32 7, %s179
          %p181 = scmp.lt.s32.totalorder %s180, 3
          %s182 = scalar_select %p181, %s180, 3
          %s183 = smul.u32 32, %s182
          %s185 = ssub.s32 96, %s183
          %186 = vsyncadd %s175, %s185
          %p187 = scmp.ne.s32.totalorder 0, %s183
          %s188 = smul.addr %s25, 7
          %s189 = sadd.s32 %s179, %s188
          %s190 = smul.addr %s189, 32
          %s191 = scalar_lea.hbm %s0, %s190
          %s192 = smul.u32 %s182, 2
          %s193 = sshll.u32 %s192, 4
          %s194 = sshll.u32 %s178, 4
          %s195 = int_to_ptr.vmem [resolvable:$true] %s194
          %197 = dma.hbm_to_vmem [thread:$0]  (%p187), %s191, %s193, %s195, %s175
        $region24: #{tpu_custom_call.1} parent=19 // pred_fallthru
          _
        // Predicated region
        $region25: #{tpu_custom_call.1} parent=19 // pred_check
          %p198 = pneg %p84
        $region26: #{tpu_custom_call.1} parent=19 // pred_check_branch
          %200 = sbr.rel (%p198) target = $region28
        $region27: #{tpu_custom_call.1} parent=19 // pred_region
          %s201 = sand.u32 %s18, 1
          %s202 = scalar_lea.sflag [#allocation7], %s201
          %s203 = sand.u32 %s74, 1
          %s204 = smul.addr %s203, 2
          %s205 = scalar_lea.vmem [#allocation6], %s204
          %s206 = sadd.s32 %s26, 1
          %s207 = smul.u32 %s206, 3
          %s209 = ssub.s32 32, 32
          %210 = vsyncadd %s202, %s209
          %s211 = smul.addr %s25, 7
          %s212 = sadd.s32 %s207, %s211
          %s213 = smul.addr %s212, 32
          %s214 = scalar_lea.hbm %s1, %s213
          %s216 = sshll.u32 %s205, 4
          %s217 = int_to_ptr.vmem [resolvable:$true] %s216
          %219 = dma.hbm_to_vmem [thread:$0]  %s214, 32, %s217, %s202
        $region28: #{tpu_custom_call.1} parent=19 // pred_fallthru
          _
      $region20: #{tpu_custom_call.1} parent=5 // pred_fallthru
        _
      %p220 = scmp.le.s32.totalorder 1, %s18
      %p221 = scmp.lt.s32.totalorder %s18, 5
      %p222 = pnand %p220, %p221
      %p223 = pneg %p222
      // Predicated region
      $region29: #{tpu_custom_call.1} parent=5 // pred_check
        _
      $region30: #{tpu_custom_call.1} parent=5 // pred_check_branch
        %225 = sbr.rel (%p222) target = $region32
      $region31: #{tpu_custom_call.1} parent=5 // pred_region
        %s226 = ssub.s32 %s18, 1
        %s227 = sand.u32 %s45, 1
        %s228 = scalar_lea.sflag [#allocation4], %s227
        %s229 = sand.u32 %s45, 1
        %s230 = smul.addr %s229, 6
        %s231 = scalar_lea.vmem [#allocation3], %s230
        // Predicated region
        $region33: #{tpu_custom_call.1} parent=31 // pred_check
          %p232 = pneg %p58
        $region34: #{tpu_custom_call.1} parent=31 // pred_check_branch
          %234 = sbr.rel (%p232) target = $region36
        $region35: #{tpu_custom_call.1} parent=31 // pred_region
          %235 = dma.done %s228, 96
        $region36: #{tpu_custom_call.1} parent=31 // pred_fallthru
          _
        %s236 = sand.u32 %s23, 1
        %s237 = scalar_lea.sflag [#allocation7], %s236
        %s238 = sand.u32 %s77, 1
        %s239 = smul.addr %s238, 2
        %s240 = scalar_lea.vmem [#allocation6], %s239
        // Predicated region
        $region37: #{tpu_custom_call.1} parent=31 // pred_check
          %p241 = pneg %p90
        $region38: #{tpu_custom_call.1} parent=31 // pred_check_branch
          %243 = sbr.rel (%p241) target = $region40
        $region39: #{tpu_custom_call.1} parent=31 // pred_region
          %244 = dma.done %s237, 32
        $region40: #{tpu_custom_call.1} parent=31 // pred_fallthru
          _
        // Predicated region
        $region41: #{tpu_custom_call.1} parent=31 // pred_check
          %p245 = pneg %p111
        $region42: #{tpu_custom_call.1} parent=31 // pred_check_branch
          %247 = sbr.rel (%p245) target = $region44
        $region43: #{tpu_custom_call.1} parent=31 // pred_region
          %248 = dma.done [#allocation7], 128
        $region44: #{tpu_custom_call.1} parent=31 // pred_fallthru
          _
        %s249 = sand.u32 %s45, 1
        %s250 = scalar_lea.sflag [#allocation4], %s249
        %s251 = sand.u32 %s45, 1
        %s252 = smul.addr %s251, 6
        %s253 = scalar_lea.vmem [#allocation3], %s252
        %p254 = pneg %p58
        %p255 = pneg %p55
        %s256 = sand.u32 %s23, 1
        %s257 = scalar_lea.sflag [#allocation7], %s256
        %s258 = sand.u32 %s77, 1
        %s259 = smul.addr %s258, 2
        %s260 = scalar_lea.vmem [#allocation6], %s259
        %p261 = pneg %p90
        %p262 = pneg %p87
        %p263 = pneg %p111
        %p264 = pneg %p108
        %p265 = pneg %p139
        %p266 = pneg %p136
        %s267 = sand.u32 %s126, 1
        %s268 = scalar_lea.sflag [#allocation5], %s267
        %s269 = sand.u32 %s126, 1
        %s270 = smul.addr %s269, 48
        %s271 = scalar_lea.vmem [#allocation9], %s270
        %s272 = smul.u32 3, %s28
        %s273 = ssub.s32 7, %s272
        %p274 = scmp.lt.s32.totalorder %s273, 3
        %s275 = scalar_select %p274, %s273, 3
        %s276 = smul.u32 32, %s275
        %s277 = sadd.s32 %s28, 1
        %s278 = smul.u32 %s277, 3
        %s279 = smul.u32 3, %s28
        %281 = vst [vmem:[#allocation2 + $0x30] sm:$0xfc] 0.0
        %282 = vst [vmem:[#allocation2 + $0x38] sm:$0xfc] 0.0
        %283 = vst [vmem:[#allocation2 + $0x40] sm:$0xfc] 0.0
        %v284 = vld [vmem:[%s231] sm:$0x15]
        %v285 = vld [vmem:[%s240] sm:$0x1]
        %v287 = vcombine.high %v284, %v284
        %v289 = vunpack.c.l.s4 1983009808
        %v290 = vunpack.c.0.s8 %v289
        %v291 = vlaneseq
        %v292 = vshrl.u32 %v291, 7
        %v293 = vsub.s32 %v290, %v292
        %v294 = vrot.slane %v284, %v293
        %v296 = vunpack.c.l.s4 1983009808
        %v297 = vunpack.c.0.s8 %v296
        %v298 = vlaneseq
        %v299 = vshrl.u32 %v298, 7
        %v300 = vsub.s32 %v297, %v299
        %v301 = vrot.slane %v287, %v300
        %v302 = vcombine.high %v294, %v294
        %v306 = vunpack.c.l.bf16 %v294
        %v307 = vunpack.c.l.bf16 %v302
        %v308 = vunpack.c.l.bf16 %v301
        %v309 = vunpack.c.l.bf16 %v285
        %v313 = vcombine.low %v306, %v307
        %v315 = vunpack.c.l.s4 1966171168
        %v316 = vunpack.c.0.s8 %v315
        %v317 = vlaneseq
        %v318 = vshrl.u32 %v317, 7
        %v319 = vsub.s32 %v316, %v318
        %v320 = vrot.slane %v313, %v319
        %v322 = vunpack.c.l.s4 1966171168
        %v323 = vunpack.c.0.s8 %v322
        %v324 = vlaneseq
        %v325 = vshrl.u32 %v324, 7
        %v326 = vsub.s32 %v323, %v325
        %v327 = vrot.slane %v308, %v326
        %v328 = vcombine.low %v320, %v327
        %v330 = vunpack.c.l.s4 1966171168
        %v331 = vunpack.c.0.s8 %v330
        %v332 = vlaneseq
        %v333 = vshrl.u32 %v332, 7
        %v334 = vsub.s32 %v331, %v333
        %v335 = vrot.slane %v328, %v334
        %v337 = vlaneseq
        %vm338 = vcmp.ge.s32.totalorder %v337, 0
        %vm339 = vcmp.lt.s32.totalorder %v337, 384
        %vm340 = vmand %vm338, %vm339
        %341 = vst.msk [vmem:[#allocation2] ss:$8 sm:$0x7] %vm340, %v335
        %342 = vst.msk [vmem:[#allocation2] ss:$8 sm:$0x0] %vm340, %v335
        %v344 = vcombine.low %v308, %v309
        %v346 = vunpack.c.l.s4 1966171168
        %v347 = vunpack.c.0.s8 %v346
        %v348 = vlaneseq
        %v349 = vshrl.u32 %v348, 7
        %v350 = vsub.s32 %v347, %v349
        %v351 = vrot.slane %v344, %v350
        %v352 = vcombine.low %v320, %v351
        %v354 = vunpack.c.l.s4 1966171168
        %v355 = vunpack.c.0.s8 %v354
        %v356 = vlaneseq
        %v357 = vshrl.u32 %v356, 7
        %v358 = vsub.s32 %v355, %v357
        %v359 = vrot.slane %v352, %v358
        %360 = vrot.lane.b32.xlu0 %v359, 127
        %v361 = vpop.permute.xlu0 %360
        %v362 = vrot.slane %v361, 1
        %vm363 = vcmask 1039360
        %v364 = vsel %vm363, %v361, %v362
        %s366 = scalar_lea.vmem [#allocation2], 1
        %367 = vst.msk [vmem:[%s366] ss:$8 sm:$0x7] %vm340, %v364
        %368 = vst.msk [vmem:[%s366] ss:$8 sm:$0x0] %vm340, %v364
        %369 = vrot.lane.b32.xlu0 %v359, 126
        %v370 = vpop.permute.xlu0 %369
        %v371 = vrot.slane %v370, 1
        %vm372 = vcmask 1031168
        %v373 = vsel %vm372, %v370, %v371
        %s375 = scalar_lea.vmem [#allocation2], 2
        %376 = vst.msk [vmem:[%s375] ss:$8 sm:$0x7] %vm340, %v373
        %377 = vst.msk [vmem:[%s375] ss:$8 sm:$0x0] %vm340, %v373
        %378 = vrot.lane.b32.xlu0 %v359, 125
        %v379 = vpop.permute.xlu0 %378
        %v380 = vrot.slane %v379, 1
        %vm381 = vcmask 1022976
        %v382 = vsel %vm381, %v379, %v380
        %s384 = scalar_lea.vmem [#allocation2], 3
        %385 = vst.msk [vmem:[%s384] ss:$8 sm:$0x7] %vm340, %v382
        %386 = vst.msk [vmem:[%s384] ss:$8 sm:$0x0] %vm340, %v382
        %387 = vrot.lane.b32.xlu0 %v359, 124
        %v388 = vpop.permute.xlu0 %387
        %v389 = vrot.slane %v388, 1
        %vm390 = vcmask 1014784
        %v391 = vsel %vm390, %v388, %v389
        %s393 = scalar_lea.vmem [#allocation2], 4
        %394 = vst.msk [vmem:[%s393] ss:$8 sm:$0x7] %vm340, %v391
        %395 = vst.msk [vmem:[%s393] ss:$8 sm:$0x0] %vm340, %v391
        %396 = vrot.lane.b32.xlu0 %v359, 123
        %v397 = vpop.permute.xlu0 %396
        %v398 = vrot.slane %v397, 1
        %vm399 = vcmask 1006592
        %v400 = vsel %vm399, %v397, %v398
        %s402 = scalar_lea.vmem [#allocation2], 5
        %403 = vst.msk [vmem:[%s402] ss:$8 sm:$0x7] %vm340, %v400
        %404 = vst.msk [vmem:[%s402] ss:$8 sm:$0x0] %vm340, %v400
        %405 = vrot.lane.b32.xlu0 %v359, 122
        %v406 = vpop.permute.xlu0 %405
        %v407 = vrot.slane %v406, 1
        %vm408 = vcmask 998400
        %v409 = vsel %vm408, %v406, %v407
        %s411 = scalar_lea.vmem [#allocation2], 6
        %412 = vst.msk [vmem:[%s411] ss:$8 sm:$0x7] %vm340, %v409
        %413 = vst.msk [vmem:[%s411] ss:$8 sm:$0x0] %vm340, %v409
        %414 = vrot.lane.b32.xlu0 %v359, 121
        %v415 = vpop.permute.xlu0 %414
        %v416 = vrot.slane %v415, 1
        %vm417 = vcmask 990208
        %v418 = vsel %vm417, %v415, %v416
        %s420 = scalar_lea.vmem [#allocation2], 7
        %421 = vst.msk [vmem:[%s420] ss:$8 sm:$0x7] %vm340, %v418
        %422 = vst.msk [vmem:[%s420] ss:$8 sm:$0x0] %vm340, %v418
        %423 = vrot.lane.b32.xlu0 %v359, 120
        %v424 = vpop.permute.xlu0 %423
        %v425 = vrot.slane %v424, 1
        %vm426 = vcmask 982016
        %v427 = vsel %vm426, %v424, %v425
        %s429 = scalar_lea.vmem [#allocation2], 24
        %430 = vst.msk [vmem:[%s429] ss:$8 sm:$0x7] %vm340, %v427
        %431 = vst.msk [vmem:[%s429] ss:$8 sm:$0x0] %vm340, %v427
        %v432 = vld [vmem:[%s231] sm:$0x15]
        %v433 = vld [vmem:[%s240] sm:$0x1]
        %v435 = vcombine.high %v432, %v432
        %v437 = vunpack.c.l.s4 1983009808
        %v438 = vunpack.c.0.s8 %v437
        %v439 = vlaneseq
        %v440 = vshrl.u32 %v439, 7
        %v441 = vsub.s32 %v438, %v440
        %v442 = vrot.slane %v432, %v441
        %v444 = vunpack.c.l.s4 1983009808
        %v445 = vunpack.c.0.s8 %v444
        %v446 = vlaneseq
        %v447 = vshrl.u32 %v446, 7
        %v448 = vsub.s32 %v445, %v447
        %v449 = vrot.slane %v435, %v448
        %v450 = vcombine.high %v442, %v442
        %v454 = vunpack.c.l.bf16 %v442
        %v455 = vunpack.c.l.bf16 %v450
        %v456 = vunpack.c.l.bf16 %v449
        %v457 = vunpack.c.l.bf16 %v433
        %v461 = vcombine.low %v454, %v455
        %v463 = vunpack.c.l.s4 1966171168
        %v464 = vunpack.c.0.s8 %v463
        %v465 = vlaneseq
        %v466 = vshrl.u32 %v465, 7
        %v467 = vsub.s32 %v464, %v466
        %v468 = vrot.slane %v461, %v467
        %v470 = vunpack.c.l.s4 1966171168
        %v471 = vunpack.c.0.s8 %v470
        %v472 = vlaneseq
        %v473 = vshrl.u32 %v472, 7
        %v474 = vsub.s32 %v471, %v473
        %v475 = vrot.slane %v456, %v474
        %v476 = vcombine.high %v468, %v475
        %v478 = vunpack.c.l.s4 1966171168
        %v479 = vunpack.c.0.s8 %v478
        %v480 = vlaneseq
        %v481 = vshrl.u32 %v480, 7
        %v482 = vsub.s32 %v479, %v481
        %v483 = vrot.slane %v476, %v482
        %s485 = scalar_lea.vmem [#allocation2], 25
        %486 = vst.msk [vmem:[%s485] ss:$8 sm:$0x7] %vm340, %v483
        %487 = vst.msk [vmem:[%s485] ss:$8 sm:$0x0] %vm340, %v483
        %v489 = vcombine.low %v456, %v457
        %v491 = vunpack.c.l.s4 1966171168
        %v492 = vunpack.c.0.s8 %v491
        %v493 = vlaneseq
        %v494 = vshrl.u32 %v493, 7
        %v495 = vsub.s32 %v492, %v494
        %v496 = vrot.slane %v489, %v495
        %v497 = vcombine.high %v468, %v496
        %v499 = vunpack.c.l.s4 1966171168
        %v500 = vunpack.c.0.s8 %v499
        %v501 = vlaneseq
        %v502 = vshrl.u32 %v501, 7
        %v503 = vsub.s32 %v500, %v502
        %v504 = vrot.slane %v497, %v503
        %505 = vrot.lane.b32.xlu0 %v504, 127
        %v506 = vpop.permute.xlu0 %505
        %v507 = vrot.slane %v506, 1
        %v508 = vsel %vm363, %v506, %v507
        %s510 = scalar_lea.vmem [#allocation2], 26
        %511 = vst.msk [vmem:[%s510] ss:$8 sm:$0x7] %vm340, %v508
        %512 = vst.msk [vmem:[%s510] ss:$8 sm:$0x0] %vm340, %v508
        %513 = vrot.lane.b32.xlu0 %v504, 126
        %v514 = vpop.permute.xlu0 %513
        %v515 = vrot.slane %v514, 1
        %v516 = vsel %vm372, %v514, %v515
        %s518 = scalar_lea.vmem [#allocation2], 27
        %519 = vst.msk [vmem:[%s518] ss:$8 sm:$0x7] %vm340, %v516
        %520 = vst.msk [vmem:[%s518] ss:$8 sm:$0x0] %vm340, %v516
        %521 = vrot.lane.b32.xlu0 %v504, 125
        %v522 = vpop.permute.xlu0 %521
        %v523 = vrot.slane %v522, 1
        %v524 = vsel %vm381, %v522, %v523
        %s526 = scalar_lea.vmem [#allocation2], 28
        %527 = vst.msk [vmem:[%s526] ss:$8 sm:$0x7] %vm340, %v524
        %528 = vst.msk [vmem:[%s526] ss:$8 sm:$0x0] %vm340, %v524
        %529 = vrot.lane.b32.xlu0 %v504, 124
        %v530 = vpop.permute.xlu0 %529
        %v531 = vrot.slane %v530, 1
        %v532 = vsel %vm390, %v530, %v531
        %s534 = scalar_lea.vmem [#allocation2], 29
        %535 = vst.msk [vmem:[%s534] ss:$8 sm:$0x7] %vm340, %v532
        %536 = vst.msk [vmem:[%s534] ss:$8 sm:$0x0] %vm340, %v532
        %537 = vrot.lane.b32.xlu0 %v504, 123
        %v538 = vpop.permute.xlu0 %537
        %v539 = vrot.slane %v538, 1
        %v540 = vsel %vm399, %v538, %v539
        %s542 = scalar_lea.vmem [#allocation2], 30
        %543 = vst.msk [vmem:[%s542] ss:$8 sm:$0x7] %vm340, %v540
        %544 = vst.msk [vmem:[%s542] ss:$8 sm:$0x0] %vm340, %v540
        %545 = vrot.lane.b32.xlu0 %v504, 122
        %v546 = vpop.permute.xlu0 %545
        %v547 = vrot.slane %v546, 1
        %v548 = vsel %vm408, %v546, %v547
        %s550 = scalar_lea.vmem [#allocation2], 31
        %551 = vst.msk [vmem:[%s550] ss:$8 sm:$0x7] %vm340, %v548
        %552 = vst.msk [vmem:[%s550] ss:$8 sm:$0x0] %vm340, %v548
        %553 = vrot.lane.b32.xlu0 %v504, 121
        %v554 = vpop.permute.xlu0 %553
        %v555 = vrot.slane %v554, 1
        %v556 = vsel %vm417, %v554, %v555
        %s558 = scalar_lea.vmem [#allocation2], 48
        %559 = vst.msk [vmem:[%s558] ss:$8 sm:$0x7] %vm340, %v556
        %560 = vst.msk [vmem:[%s558] ss:$8 sm:$0x0] %vm340, %v556
        %561 = vrot.lane.b32.xlu0 %v504, 120
        %v562 = vpop.permute.xlu0 %561
        %v563 = vrot.slane %v562, 1
        %v564 = vsel %vm426, %v562, %v563
        %s566 = scalar_lea.vmem [#allocation2], 49
        %567 = vst.msk [vmem:[%s566] ss:$8 sm:$0x7] %vm340, %v564
        %568 = vst.msk [vmem:[%s566] ss:$8 sm:$0x0] %vm340, %v564
        %v569 = vld [vmem:[#allocation8] sm:$0xf]
        %v570 = vld [vmem:[#allocation2] sm:$0xff]
        %v571 = vld [vmem:[#allocation2 + $0x8] sm:$0xff]
        %v572 = vld [vmem:[#allocation2 + $0x10] sm:$0xff]
        %v573 = vld [vmem:[#allocation2 + $0x18] sm:$0xff]
        %v574 = vld [vmem:[#allocation2 + $0x20] sm:$0xff]
        %v575 = vld [vmem:[#allocation2 + $0x28] sm:$0xff]
        %v576 = vld [vmem:[#allocation2 + $0x30] sm:$0xff]
        %v577 = vld [vmem:[#allocation2 + $0x38] sm:$0xff]
        %v578 = vld [vmem:[#allocation2 + $0x40] sm:$0xff]
        %v579 = vpack.c.bf16 %v573, %v570
        %v580 = vpack.c.bf16 %v574, %v571
        %v581 = vpack.c.bf16 %v575, %v572
        %v582 = vpack.c.bf16 %v576, %v576
        %v583 = vpack.c.bf16 %v577, %v577
        %v584 = vpack.c.bf16 %v578, %v578
        %vm585 = vcmask 195584
        %v587 = vsel %vm585, %v569, 0
        %vm589 = vcmask 1043456
        %v591 = vsel %vm589, %v582, 0
        %v594 = vsel %vm589, %v583, 0
        %v597 = vsel %vm589, %v584, 0
        %599 = vmatprep.subr.bf16.mxu0 %v580
        %600 = vmatpush1.bf16.msra.mxu0 %v579
        %601 = vmatprep.subr.bf16.mxu0 %v594
        %602 = vmatpush1.bf16.msra.mxu0 %v591
        %603 = vmatprep.subr.bf16.mxu0 0
        %604 = vmatpush1.bf16.msra.mxu0 0
        %605 = vmatprep.subr.bf16.mxu0 0
        %606 = vmatpush1.bf16.msra.mxu0 0
        %607 = vmatprep.subr.bf16.mxu0 0
        %608 = vmatpush1.bf16.msra.mxu0 0
        %609 = vmatprep.subr.bf16.mxu0 0
        %610 = vmatpush1.bf16.msra.mxu0 0
        %611 = vmatprep.subr.bf16.mxu0 0
        %612 = vmatpush1.bf16.msra.mxu0 0
        %613 = vmatprep.subr.bf16.mxu0 0
        %614 = vmatpush1.bf16.msra.mxu0 0
        %615 = vmatprep.subr.bf16.mxu0 0
        %616 = vmatpush1.bf16.msra.mxu0 0
        %617 = vmatprep.subr.bf16.mxu0 0
        %618 = vmatpush1.bf16.msra.mxu0 0
        %619 = vmatprep.subr.bf16.mxu0 0
        %620 = vmatpush1.bf16.msra.mxu0 0
        %621 = vmatprep.subr.bf16.mxu0 0
        %622 = vmatpush1.bf16.msra.mxu0 0
        %623 = vmatprep.subr.bf16.mxu0 0
        %624 = vmatpush1.bf16.msra.mxu0 0
        %625 = vmatprep.subr.bf16.mxu0 0
        %626 = vmatpush1.bf16.msra.mxu0 0
        %627 = vmatprep.subr.bf16.mxu0 0
        %628 = vmatpush1.bf16.msra.mxu0 0
        %629 = vmatprep.subr.bf16.mxu0 0
        %630 = vmatpush1.bf16.msra.mxu0 0
        %631 = vmatprep.mubr.bf16.mxu0 0
        %632 = vmatmul.mubr.bf16.gmra.mrb[0].mxu0 %v587
        %v633 = vpop.f32.mrb[0].mxu0
        %v634 = vadd.f32 0.0, %v633
        %v635 = vpop.f32.mrb[0].mxu0
        %v636 = vadd.f32 0.0, %v635
        %v637 = vpop.f32.mrb[0].mxu0
        %v638 = vpop.f32.mrb[0].mxu0
        %639 = vdwg.mxu0
        %640 = vmatprep.subr.bf16.mxu0 0
        %641 = vmatpush1.bf16.msra.mxu0 %v581
        %642 = vmatprep.subr.bf16.mxu0 0
        %643 = vmatpush1.bf16.msra.mxu0 %v597
        %644 = vmatprep.subr.bf16.mxu0 0
        %645 = vmatpush1.bf16.msra.mxu0 0
        %646 = vmatprep.subr.bf16.mxu0 0
        %647 = vmatpush1.bf16.msra.mxu0 0
        %648 = vmatprep.subr.bf16.mxu0 0
        %649 = vmatpush1.bf16.msra.mxu0 0
        %650 = vmatprep.subr.bf16.mxu0 0
        %651 = vmatpush1.bf16.msra.mxu0 0
        %652 = vmatprep.subr.bf16.mxu0 0
        %653 = vmatpush1.bf16.msra.mxu0 0
        %654 = vmatprep.subr.bf16.mxu0 0
        %655 = vmatpush1.bf16.msra.mxu0 0
        %656 = vmatprep.subr.bf16.mxu0 0
        %657 = vmatpush1.bf16.msra.mxu0 0
        %658 = vmatprep.subr.bf16.mxu0 0
        %659 = vmatpush1.bf16.msra.mxu0 0
        %660 = vmatprep.subr.bf16.mxu0 0
        %661 = vmatpush1.bf16.msra.mxu0 0
        %662 = vmatprep.subr.bf16.mxu0 0
        %663 = vmatpush1.bf16.msra.mxu0 0
        %664 = vmatprep.subr.bf16.mxu0 0
        %665 = vmatpush1.bf16.msra.mxu0 0
        %666 = vmatprep.subr.bf16.mxu0 0
        %667 = vmatpush1.bf16.msra.mxu0 0
        %668 = vmatprep.subr.bf16.mxu0 0
        %669 = vmatpush1.bf16.msra.mxu0 0
        %670 = vmatprep.subr.bf16.mxu0 0
        %671 = vmatpush1.bf16.msra.mxu0 0
        %672 = vmatprep.mubr.bf16.mxu0 0
        %673 = vmatmul.mubr.bf16.gmra.mrb[0].mxu0 %v587
        %v674 = vpop.f32.mrb[0].mxu0
        %v675 = vadd.f32 0.0, %v674
        %v676 = vpop.f32.mrb[0].mxu0
        %v677 = vpop.f32.mrb[0].mxu0
        %v678 = vpop.f32.mrb[0].mxu0
        %679 = vdwg.mxu0
        %v680 = vld [vmem:[%s231] sm:$0x2a]
        %v681 = vld [vmem:[%s240] sm:$0x2]
        %v683 = vcombine.high %v680, %v680
        %v685 = vunpack.c.l.s4 1983009808
        %v686 = vunpack.c.0.s8 %v685
        %v687 = vlaneseq
        %v688 = vshrl.u32 %v687, 7
        %v689 = vsub.s32 %v686, %v688
        %v690 = vrot.slane %v680, %v689
        %v692 = vunpack.c.l.s4 1983009808
        %v693 = vunpack.c.0.s8 %v692
        %v694 = vlaneseq
        %v695 = vshrl.u32 %v694, 7
        %v696 = vsub.s32 %v693, %v695
        %v697 = vrot.slane %v683, %v696
        %v698 = vcombine.high %v690, %v690
        %v702 = vunpack.c.l.bf16 %v690
        %v703 = vunpack.c.l.bf16 %v698
        %v704 = vunpack.c.l.bf16 %v697
        %v705 = vunpack.c.l.bf16 %v681
        %v709 = vcombine.low %v702, %v703
        %v711 = vunpack.c.l.s4 1966171168
        %v712 = vunpack.c.0.s8 %v711
        %v713 = vlaneseq
        %v714 = vshrl.u32 %v713, 7
        %v715 = vsub.s32 %v712, %v714
        %v716 = vrot.slane %v709, %v715
        %v718 = vunpack.c.l.s4 1966171168
        %v719 = vunpack.c.0.s8 %v718
        %v720 = vlaneseq
        %v721 = vshrl.u32 %v720, 7
        %v722 = vsub.s32 %v719, %v721
        %v723 = vrot.slane %v704, %v722
        %v724 = vcombine.low %v716, %v723
        %v726 = vunpack.c.l.s4 1966171168
        %v727 = vunpack.c.0.s8 %v726
        %v728 = vlaneseq
        %v729 = vshrl.u32 %v728, 7
        %v730 = vsub.s32 %v727, %v729
        %v731 = vrot.slane %v724, %v730
        %v732 = vcombine.high %v731, %v731
        %734 = vst.msk [vmem:[#allocation2] ss:$8 sm:$0x7] %vm340, %v732
        %735 = vst.msk [vmem:[#allocation2] ss:$8 sm:$0x0] %vm340, %v732
        %v737 = vcombine.low %v704, %v705
        %v739 = vunpack.c.l.s4 1966171168
        %v740 = vunpack.c.0.s8 %v739
        %v741 = vlaneseq
        %v742 = vshrl.u32 %v741, 7
        %v743 = vsub.s32 %v740, %v742
        %v744 = vrot.slane %v737, %v743
        %v745 = vcombine.low %v716, %v744
        %v747 = vunpack.c.l.s4 1966171168
        %v748 = vunpack.c.0.s8 %v747
        %v749 = vlaneseq
        %v750 = vshrl.u32 %v749, 7
        %v751 = vsub.s32 %v748, %v750
        %v752 = vrot.slane %v745, %v751
        %v753 = vcombine.high %v752, %v752
        %754 = vrot.lane.b32.xlu0 %v753, 127
        %v755 = vpop.permute.xlu0 %754
        %v756 = vrot.slane %v755, 1
        %v757 = vsel %vm363, %v755, %v756
        %759 = vst.msk [vmem:[%s366] ss:$8 sm:$0x7] %vm340, %v757
        %760 = vst.msk [vmem:[%s366] ss:$8 sm:$0x0] %vm340, %v757
        %761 = vrot.lane.b32.xlu0 %v753, 126
        %v762 = vpop.permute.xlu0 %761
        %v763 = vrot.slane %v762, 1
        %v764 = vsel %vm372, %v762, %v763
        %766 = vst.msk [vmem:[%s375] ss:$8 sm:$0x7] %vm340, %v764
        %767 = vst.msk [vmem:[%s375] ss:$8 sm:$0x0] %vm340, %v764
        %768 = vrot.lane.b32.xlu0 %v753, 125
        %v769 = vpop.permute.xlu0 %768
        %v770 = vrot.slane %v769, 1
        %v771 = vsel %vm381, %v769, %v770
        %773 = vst.msk [vmem:[%s384] ss:$8 sm:$0x7] %vm340, %v771
        %774 = vst.msk [vmem:[%s384] ss:$8 sm:$0x0] %vm340, %v771
        %775 = vrot.lane.b32.xlu0 %v753, 124
        %v776 = vpop.permute.xlu0 %775
        %v777 = vrot.slane %v776, 1
        %v778 = vsel %vm390, %v776, %v777
        %780 = vst.msk [vmem:[%s393] ss:$8 sm:$0x7] %vm340, %v778
        %781 = vst.msk [vmem:[%s393] ss:$8 sm:$0x0] %vm340, %v778
        %782 = vrot.lane.b32.xlu0 %v753, 123
        %v783 = vpop.permute.xlu0 %782
        %v784 = vrot.slane %v783, 1
        %v785 = vsel %vm399, %v783, %v784
        %787 = vst.msk [vmem:[%s402] ss:$8 sm:$0x7] %vm340, %v785
        %788 = vst.msk [vmem:[%s402] ss:$8 sm:$0x0] %vm340, %v785
        %789 = vrot.lane.b32.xlu0 %v753, 122
        %v790 = vpop.permute.xlu0 %789
        %v791 = vrot.slane %v790, 1
        %v792 = vsel %vm408, %v790, %v791
        %794 = vst.msk [vmem:[%s411] ss:$8 sm:$0x7] %vm340, %v792
        %795 = vst.msk [vmem:[%s411] ss:$8 sm:$0x0] %vm340, %v792
        %796 = vrot.lane.b32.xlu0 %v753, 121
        %v797 = vpop.permute.xlu0 %796
        %v798 = vrot.slane %v797, 1
        %v799 = vsel %vm417, %v797, %v798
        %801 = vst.msk [vmem:[%s420] ss:$8 sm:$0x7] %vm340, %v799
        %802 = vst.msk [vmem:[%s420] ss:$8 sm:$0x0] %vm340, %v799
        %803 = vrot.lane.b32.xlu0 %v753, 120
        %v804 = vpop.permute.xlu0 %803
        %v805 = vrot.slane %v804, 1
        %v806 = vsel %vm426, %v804, %v805
        %808 = vst.msk [vmem:[%s429] ss:$8 sm:$0x7] %vm340, %v806
        %809 = vst.msk [vmem:[%s429] ss:$8 sm:$0x0] %vm340, %v806
        %v810 = vld [vmem:[%s231] sm:$0x2a]
        %v811 = vld [vmem:[%s240] sm:$0x2]
        %v813 = vcombine.high %v810, %v810
        %v815 = vunpack.c.l.s4 1983009808
        %v816 = vunpack.c.0.s8 %v815
        %v817 = vlaneseq
        %v818 = vshrl.u32 %v817, 7
        %v819 = vsub.s32 %v816, %v818
        %v820 = vrot.slane %v810, %v819
        %v822 = vunpack.c.l.s4 1983009808
        %v823 = vunpack.c.0.s8 %v822
        %v824 = vlaneseq
        %v825 = vshrl.u32 %v824, 7
        %v826 = vsub.s32 %v823, %v825
        %v827 = vrot.slane %v813, %v826
        %v828 = vcombine.high %v820, %v820
        %v832 = vunpack.c.l.bf16 %v820
        %v833 = vunpack.c.l.bf16 %v828
        %v834 = vunpack.c.l.bf16 %v827
        %v835 = vunpack.c.l.bf16 %v811
        %v839 = vcombine.low %v832, %v833
        %v841 = vunpack.c.l.s4 1966171168
        %v842 = vunpack.c.0.s8 %v841
        %v843 = vlaneseq
        %v844 = vshrl.u32 %v843, 7
        %v845 = vsub.s32 %v842, %v844
        %v846 = vrot.slane %v839, %v845
        %v848 = vunpack.c.l.s4 1966171168
        %v849 = vunpack.c.0.s8 %v848
        %v850 = vlaneseq
        %v851 = vshrl.u32 %v850, 7
        %v852 = vsub.s32 %v849, %v851
        %v853 = vrot.slane %v834, %v852
        %v854 = vcombine.high %v846, %v853
        %v856 = vunpack.c.l.s4 1966171168
        %v857 = vunpack.c.0.s8 %v856
        %v858 = vlaneseq
        %v859 = vshrl.u32 %v858, 7
        %v860 = vsub.s32 %v857, %v859
        %v861 = vrot.slane %v854, %v860
        %v862 = vcombine.high %v861, %v861
        %864 = vst.msk [vmem:[%s485] ss:$8 sm:$0x7] %vm340, %v862
        %865 = vst.msk [vmem:[%s485] ss:$8 sm:$0x0] %vm340, %v862
        %v867 = vcombine.low %v834, %v835
        %v869 = vunpack.c.l.s4 1966171168
        %v870 = vunpack.c.0.s8 %v869
        %v871 = vlaneseq
        %v872 = vshrl.u32 %v871, 7
        %v873 = vsub.s32 %v870, %v872
        %v874 = vrot.slane %v867, %v873
        %v875 = vcombine.high %v846, %v874
        %v877 = vunpack.c.l.s4 1966171168
        %v878 = vunpack.c.0.s8 %v877
        %v879 = vlaneseq
        %v880 = vshrl.u32 %v879, 7
        %v881 = vsub.s32 %v878, %v880
        %v882 = vrot.slane %v875, %v881
        %v883 = vcombine.high %v882, %v882
        %884 = vrot.lane.b32.xlu0 %v883, 127
        %v885 = vpop.permute.xlu0 %884
        %v886 = vrot.slane %v885, 1
        %v887 = vsel %vm363, %v885, %v886
        %889 = vst.msk [vmem:[%s510] ss:$8 sm:$0x7] %vm340, %v887
        %890 = vst.msk [vmem:[%s510] ss:$8 sm:$0x0] %vm340, %v887
        %891 = vrot.lane.b32.xlu0 %v883, 126
        %v892 = vpop.permute.xlu0 %891
        %v893 = vrot.slane %v892, 1
        %v894 = vsel %vm372, %v892, %v893
        %896 = vst.msk [vmem:[%s518] ss:$8 sm:$0x7] %vm340, %v894
        %897 = vst.msk [vmem:[%s518] ss:$8 sm:$0x0] %vm340, %v894
        %898 = vrot.lane.b32.xlu0 %v883, 125
        %v899 = vpop.permute.xlu0 %898
        %v900 = vrot.slane %v899, 1
        %v901 = vsel %vm381, %v899, %v900
        %903 = vst.msk [vmem:[%s526] ss:$8 sm:$0x7] %vm340, %v901
        %904 = vst.msk [vmem:[%s526] ss:$8 sm:$0x0] %vm340, %v901
        %905 = vrot.lane.b32.xlu0 %v883, 124
        %v906 = vpop.permute.xlu0 %905
        %v907 = vrot.slane %v906, 1
        %v908 = vsel %vm390, %v906, %v907
        %910 = vst.msk [vmem:[%s534] ss:$8 sm:$0x7] %vm340, %v908
        %911 = vst.msk [vmem:[%s534] ss:$8 sm:$0x0] %vm340, %v908
        %912 = vrot.lane.b32.xlu0 %v883, 123
        %v913 = vpop.permute.xlu0 %912
        %v914 = vrot.slane %v913, 1
        %v915 = vsel %vm399, %v913, %v914
        %917 = vst.msk [vmem:[%s542] ss:$8 sm:$0x7] %vm340, %v915
        %918 = vst.msk [vmem:[%s542] ss:$8 sm:$0x0] %vm340, %v915
        %919 = vrot.lane.b32.xlu0 %v883, 122
        %v920 = vpop.permute.xlu0 %919
        %v921 = vrot.slane %v920, 1
        %v922 = vsel %vm408, %v920, %v921
        %924 = vst.msk [vmem:[%s550] ss:$8 sm:$0x7] %vm340, %v922
        %925 = vst.msk [vmem:[%s550] ss:$8 sm:$0x0] %vm340, %v922
        %926 = vrot.lane.b32.xlu0 %v883, 121
        %v927 = vpop.permute.xlu0 %926
        %v928 = vrot.slane %v927, 1
        %v929 = vsel %vm417, %v927, %v928
        %931 = vst.msk [vmem:[%s558] ss:$8 sm:$0x7] %vm340, %v929
        %932 = vst.msk [vmem:[%s558] ss:$8 sm:$0x0] %vm340, %v929
        %933 = vrot.lane.b32.xlu0 %v883, 120
        %v934 = vpop.permute.xlu0 %933
        %v935 = vrot.slane %v934, 1
        %v936 = vsel %vm426, %v934, %v935
        %938 = vst.msk [vmem:[%s566] ss:$8 sm:$0x7] %vm340, %v936
        %939 = vst.msk [vmem:[%s566] ss:$8 sm:$0x0] %vm340, %v936
        %v940 = vld [vmem:[#allocation8 + $0x4] sm:$0xf]
        %v941 = vld [vmem:[#allocation2] sm:$0xff]
        %v942 = vld [vmem:[#allocation2 + $0x8] sm:$0xff]
        %v943 = vld [vmem:[#allocation2 + $0x10] sm:$0xff]
        %v944 = vld [vmem:[#allocation2 + $0x18] sm:$0xff]
        %v945 = vld [vmem:[#allocation2 + $0x20] sm:$0xff]
        %v946 = vld [vmem:[#allocation2 + $0x28] sm:$0xff]
        %v947 = vld [vmem:[#allocation2 + $0x30] sm:$0xff]
        %v948 = vld [vmem:[#allocation2 + $0x38] sm:$0xff]
        %v949 = vld [vmem:[#allocation2 + $0x40] sm:$0xff]
        %v950 = vpack.c.bf16 %v944, %v941
        %v951 = vpack.c.bf16 %v945, %v942
        %v952 = vpack.c.bf16 %v946, %v943
        %v953 = vpack.c.bf16 %v947, %v947
        %v954 = vpack.c.bf16 %v948, %v948
        %v955 = vpack.c.bf16 %v949, %v949
        %v957 = vsel %vm585, %v940, 0
        %v960 = vsel %vm589, %v953, 0
        %v963 = vsel %vm589, %v954, 0
        %v966 = vsel %vm589, %v955, 0
        %968 = vmatprep.subr.bf16.mxu0 %v951
        %969 = vmatpush1.bf16.msra.mxu0 %v950
        %970 = vmatprep.subr.bf16.mxu0 %v963
        %971 = vmatpush1.bf16.msra.mxu0 %v960
        %972 = vmatprep.subr.bf16.mxu0 0
        %973 = vmatpush1.bf16.msra.mxu0 0
        %974 = vmatprep.subr.bf16.mxu0 0
        %975 = vmatpush1.bf16.msra.mxu0 0
        %976 = vmatprep.subr.bf16.mxu0 0
        %977 = vmatpush1.bf16.msra.mxu0 0
        %978 = vmatprep.subr.bf16.mxu0 0
        %979 = vmatpush1.bf16.msra.mxu0 0
        %980 = vmatprep.subr.bf16.mxu0 0
        %981 = vmatpush1.bf16.msra.mxu0 0
        %982 = vmatprep.subr.bf16.mxu0 0
        %983 = vmatpush1.bf16.msra.mxu0 0
        %984 = vmatprep.subr.bf16.mxu0 0
        %985 = vmatpush1.bf16.msra.mxu0 0
        %986 = vmatprep.subr.bf16.mxu0 0
        %987 = vmatpush1.bf16.msra.mxu0 0
        %988 = vmatprep.subr.bf16.mxu0 0
        %989 = vmatpush1.bf16.msra.mxu0 0
        %990 = vmatprep.subr.bf16.mxu0 0
        %991 = vmatpush1.bf16.msra.mxu0 0
        %992 = vmatprep.subr.bf16.mxu0 0
        %993 = vmatpush1.bf16.msra.mxu0 0
        %994 = vmatprep.subr.bf16.mxu0 0
        %995 = vmatpush1.bf16.msra.mxu0 0
        %996 = vmatprep.subr.bf16.mxu0 0
        %997 = vmatpush1.bf16.msra.mxu0 0
        %998 = vmatprep.subr.bf16.mxu0 0
        %999 = vmatpush1.bf16.msra.mxu0 0
        %1000 = vmatprep.mubr.bf16.mxu0 0
        %1001 = vmatmul.mubr.bf16.gmra.mrb[0].mxu0 %v957
        %v1002 = vpop.f32.mrb[0].mxu0
        %v1003 = vadd.f32 0.0, %v1002
        %v1004 = vpop.f32.mrb[0].mxu0
        %v1005 = vadd.f32 0.0, %v1004
        %v1006 = vpop.f32.mrb[0].mxu0
        %v1007 = vpop.f32.mrb[0].mxu0
        %1008 = vdwg.mxu0
        %1009 = vmatprep.subr.bf16.mxu0 0
        %1010 = vmatpush1.bf16.msra.mxu0 %v952
        %1011 = vmatprep.subr.bf16.mxu0 0
        %1012 = vmatpush1.bf16.msra.mxu0 %v966
        %1013 = vmatprep.subr.bf16.mxu0 0
        %1014 = vmatpush1.bf16.msra.mxu0 0
        %1015 = vmatprep.subr.bf16.mxu0 0
        %1016 = vmatpush1.bf16.msra.mxu0 0
        %1017 = vmatprep.subr.bf16.mxu0 0
        %1018 = vmatpush1.bf16.msra.mxu0 0
        %1019 = vmatprep.subr.bf16.mxu0 0
        %1020 = vmatpush1.bf16.msra.mxu0 0
        %1021 = vmatprep.subr.bf16.mxu0 0
        %1022 = vmatpush1.bf16.msra.mxu0 0
        %1023 = vmatprep.subr.bf16.mxu0 0
        %1024 = vmatpush1.bf16.msra.mxu0 0
        %1025 = vmatprep.subr.bf16.mxu0 0
        %1026 = vmatpush1.bf16.msra.mxu0 0
        %1027 = vmatprep.subr.bf16.mxu0 0
        %1028 = vmatpush1.bf16.msra.mxu0 0
        %1029 = vmatprep.subr.bf16.mxu0 0
        %1030 = vmatpush1.bf16.msra.mxu0 0
        %1031 = vmatprep.subr.bf16.mxu0 0
        %1032 = vmatpush1.bf16.msra.mxu0 0
        %1033 = vmatprep.subr.bf16.mxu0 0
        %1034 = vmatpush1.bf16.msra.mxu0 0
        %1035 = vmatprep.subr.bf16.mxu0 0
        %1036 = vmatpush1.bf16.msra.mxu0 0
        %1037 = vmatprep.subr.bf16.mxu0 0
        %1038 = vmatpush1.bf16.msra.mxu0 0
        %1039 = vmatprep.subr.bf16.mxu0 0
        %1040 = vmatpush1.bf16.msra.mxu0 0
        %1041 = vmatprep.mubr.bf16.mxu0 0
        %1042 = vmatmul.mubr.bf16.gmra.mrb[0].mxu0 %v957
        %v1043 = vpop.f32.mrb[0].mxu0
        %v1044 = vadd.f32 0.0, %v1043
        %v1045 = vpop.f32.mrb[0].mxu0
        %v1046 = vpop.f32.mrb[0].mxu0
        %v1047 = vpop.f32.mrb[0].mxu0
        %1048 = vdwg.mxu0
        %1049 = vst [vmem:[%s271] sm:$0xff] %v634
        %1050 = vst [vmem:[%s271 + $0x8] sm:$0xff] %v636
        %1051 = vst [vmem:[%s271 + $0x10] sm:$0xff] %v675
        %1052 = vst [vmem:[%s271 + $0x18] sm:$0xff] %v1003
        %1053 = vst [vmem:[%s271 + $0x20] sm:$0xff] %v1005
        %1054 = vst [vmem:[%s271 + $0x28] sm:$0xff] %v1044
        %s1055 = sand.u32 %s126, 1
        %s1056 = scalar_lea.sflag [#allocation5], %s1055
        %s1057 = sand.u32 %s126, 1
        %s1058 = smul.addr %s1057, 48
        %s1059 = scalar_lea.vmem [#allocation9], %s1058
        // Predicated region
        $region45: #{tpu_custom_call.1} parent=31 // pred_check
          %p1060 = pneg %p136
        $region46: #{tpu_custom_call.1} parent=31 // pred_check_branch
          %1062 = sbr.rel (%p1060) target = $region48
        $region47: #{tpu_custom_call.1} parent=31 // pred_region
          %s1063 = smul.u32 3, %s28
          %s1065 = ssub.s32 768, 768
          %1066 = vsyncadd %s1056, %s1065
          %s1067 = smul.addr %s27, 12
          %s1068 = sadd.s32 %s1063, %s1067
          %s1069 = smul.addr %s1068, 128
          %s1070 = scalar_lea.hbm %s3, %s1069
          %s1071 = sshll.u32 %s1059, 4
          %s1072 = int_to_ptr.vmem [resolvable:$true] %s1071
          %1077 = dma.vmem_to_hbm [thread:$0]  %s1072, 768, %s1070, %s1056, 384, 768, 24
        $region48: #{tpu_custom_call.1} parent=31 // pred_fallthru
          _
      $region32: #{tpu_custom_call.1} parent=5 // pred_fallthru
        _
      %p1078 = scmp.le.s32.totalorder 2, %s18
      // Predicated region
      $region49: #{tpu_custom_call.1} parent=5 // pred_check
        %p1079 = pneg %p1078
      $region50: #{tpu_custom_call.1} parent=5 // pred_check_branch
        %1081 = sbr.rel (%p1079) target = $region52
      $region51: #{tpu_custom_call.1} parent=5 // pred_region
        %s1082 = ssub.s32 %s18, 2
        // Predicated region
        $region53: #{tpu_custom_call.1} parent=51 // pred_check
          %p1083 = pneg %p142
        $region54: #{tpu_custom_call.1} parent=51 // pred_check_branch
          %1085 = sbr.rel (%p1083) target = $region56
        $region55: #{tpu_custom_call.1} parent=51 // pred_region
          %s1086 = sand.u32 %s127, 1
          %s1087 = scalar_lea.sflag [#allocation5], %s1086
          %s1088 = sand.u32 %s127, 1
          %s1089 = smul.addr %s1088, 48
          %s1090 = scalar_lea.vmem [#allocation9], %s1089
          %1091 = dma.done %s1087, 768
        $region56: #{tpu_custom_call.1} parent=51 // pred_fallthru
          _
      $region52: #{tpu_custom_call.1} parent=5 // pred_fallthru
        _
    $region6: #{tpu_custom_call.1} parent=1 // loop_footer
      %s22 = sadd.s32 1, %s18
    $region7: #{tpu_custom_call.1} parent=1 // loop_footer_branch
      %17 = sbr.rel target = $region3
    $region8: #{tpu_custom_call.1} parent=1 // loop_exit
      _
    %1092 = vsyncpa [#allocation4], 1
    %s1093 = scalar_lea.sflag [#allocation4], 1
    %1094 = vsyncpa %s1093, 1
    %1095 = vsyncpa [#allocation7], 1
    %s1096 = scalar_lea.sflag [#allocation7], 1
    %1097 = vsyncpa %s1096, 1
    %1098 = vsyncpa [#allocation5], 1
    %s1099 = scalar_lea.sflag [#allocation5], 1
    %1100 = vsyncpa %s1099, 1

</llo_original>
